<compile_context>
chip_gen: v7x
topology: tpu7x:2x2x1
jax: 0.10.0
libtpu: 0.0.40
codegen_flags: <defaults>
</compile_context>

<pallas_src>
import functools

import jax
import jax.numpy as jnp
from jax.experimental import pallas as pl
from jax.experimental.pallas import tpu as pltpu


def _round_up(x, m):
    return (x + m - 1) // m * m


# --------------------------------------------------------------------------
# Pallas kernel: tiled matmul + (optional) bias + (optional) LeakyReLU
# --------------------------------------------------------------------------
def _conv_matmul_kernel(*refs, apply_lrelu, slope, has_bias):
    if has_bias:
        p_ref, w_ref, b_ref, o_ref, acc_ref = refs
    else:
        p_ref, w_ref, o_ref, acc_ref = refs
        b_ref = None

    k = pl.program_id(1)

    @pl.when(k == 0)
    def _init():
        acc_ref[...] = jnp.zeros_like(acc_ref)

    # bf16 x bf16 -> f32 accumulation on the MXU.
    acc_ref[...] += jnp.dot(p_ref[...], w_ref[...],
                            preferred_element_type=jnp.float32)

    @pl.when(k == pl.num_programs(1) - 1)
    def _finish():
        acc = acc_ref[...]
        if has_bias:
            acc = acc + b_ref[...]            # f32 bias
        if apply_lrelu:
            acc = jnp.where(acc >= 0, acc, slope * acc)   # f32 LeakyReLU
        o_ref[...] = acc


def conv2d_pallas(x_nhwc, w4d, bias, *, stride, pad, apply_lrelu,
                  slope=0.01, tm=512, tk=1024):
    """Conv2d (PyTorch cross-correlation semantics) via im2col + Pallas GEMM.

    x_nhwc: [B, H, W, C]   w4d: [KH, KW, C, OC]   bias: [OC] or None
    returns [B, OH, OW, OC] float32
    """
    B, H, W, C = x_nhwc.shape
    KH, KW, _, OC = w4d.shape
    OH = (H + 2 * pad - KH) // stride + 1
    OW = (W + 2 * pad - KW) // stride + 1
    M = B * OH * OW
    K = KH * KW * C

    xb = x_nhwc.astype(jnp.bfloat16)          # bf16 before im2col: half HBM bytes

    if stride == 1 and pad == 0 and KH == H and KW == W:
        # Full-spatial kernel (cls head): im2col is just a reshape.
        patches = xb.reshape(B, K)
    else:
        xp = jnp.pad(xb, ((0, 0), (pad, pad), (pad, pad), (0, 0)))
        taps = []
        for i in range(KH):
            for j in range(KW):
                taps.append(jax.lax.slice(
                    xp,
                    (0, i, j, 0),
                    (B, i + stride * (OH - 1) + 1, j + stride * (OW - 1) + 1, C),
                    (1, stride, stride, 1)))
        # [B, OH, OW, KH*KW, C] -> [M, K]  (K ordered (kh, kw, c), matches w4d)
        patches = jnp.stack(taps, axis=3).reshape(M, K)

    # ---- pad to MXU / vreg friendly shapes ---------------------------------
    Kp = _round_up(K, 128)
    TK = min(tk, Kp)
    Kp = _round_up(Kp, TK)
    OCp = _round_up(OC, 128)                   # lane-dense output
    TM = min(tm, _round_up(M, 8))              # multiple of 8 (sublane)
    Mp = _round_up(M, TM)

    patches = jnp.pad(patches, ((0, Mp - M), (0, Kp - K)))
    w_mat = jnp.pad(w4d.reshape(K, OC).astype(jnp.bfloat16),
                    ((0, Kp - K), (0, OCp - OC)))

    has_bias = bias is not None
    inputs = [patches, w_mat]
    in_specs = [
        pl.BlockSpec((TM, TK), lambda i, k: (i, k)),     # streamed patches
        pl.BlockSpec((TK, OCp), lambda i, k: (k, 0)),    # weights (per K-step)
    ]
    if has_bias:
        b = jnp.pad(bias.astype(jnp.float32), (0, OCp - OC)).reshape(1, OCp)
        inputs.append(b)
        in_specs.append(pl.BlockSpec((1, OCp), lambda i, k: (0, 0)))

    kernel = functools.partial(_conv_matmul_kernel, apply_lrelu=apply_lrelu,
                               slope=slope, has_bias=has_bias)

    out = pl.pallas_call(
        kernel,
        out_shape=jax.ShapeDtypeStruct((Mp, OCp), jnp.float32),
        grid_spec=pltpu.PrefetchScalarGridSpec(
            num_scalar_prefetch=0,
            grid=(Mp // TM, Kp // TK),
            in_specs=in_specs,
            out_specs=pl.BlockSpec((TM, OCp), lambda i, k: (i, 0)),
            scratch_shapes=[pltpu.VMEM((TM, OCp), jnp.float32)],
        ),
        compiler_params=pltpu.CompilerParams(
            dimension_semantics=("parallel", "arbitrary"),
            vmem_limit_bytes=48 * 1024 * 1024,
        ),
    )(*inputs)

    return out[:M, :OC].reshape(B, OH, OW, OC)


# --------------------------------------------------------------------------
# Parameter construction (deterministic, synthetic)
# --------------------------------------------------------------------------
def make_discriminator_params(key, img_size, num_feature, num_repeat, c_dim):
    channels = [3] + [num_feature * (2 ** i) for i in range(num_repeat)]
    keys = jax.random.split(key, num_repeat + 2)

    body = []
    for i in range(num_repeat):
        in_ch, out_ch = channels[i], channels[i + 1]
        kw_key, kb_key = jax.random.split(keys[i])
        fan_in = 4 * 4 * in_ch
        w = jax.random.normal(kw_key, (4, 4, in_ch, out_ch),
                              jnp.float32) / jnp.sqrt(fan_in)
        b = jax.random.uniform(
            kb_key, (out_ch,), jnp.float32,
            minval=-1.0 / jnp.sqrt(fan_in), maxval=1.0 / jnp.sqrt(fan_in))
        body.append({"w": w, "b": b})

    feat = channels[-1]
    ks = img_size // (2 ** num_repeat)   # kernel size of final_conv2

    w_src = jax.random.normal(keys[num_repeat], (3, 3, feat, 1),
                              jnp.float32) / jnp.sqrt(3 * 3 * feat)
    w_cls = jax.random.normal(keys[num_repeat + 1], (ks, ks, feat, c_dim),
                              jnp.float32) / jnp.sqrt(ks * ks * feat)
    return {"body": body, "w_src": w_src, "w_cls": w_cls}


# --------------------------------------------------------------------------
# Forward passes
# --------------------------------------------------------------------------
def discriminator_forward(x_nchw, params):
    x = jnp.transpose(x_nchw, (0, 2, 3, 1))   # NCHW -> NHWC
    # Body: conv(4x4, stride 2, pad 1) + LeakyReLU(0.01), repeated.
    for layer in params["body"]:
        x = conv2d_pallas(x, layer["w"], layer["b"],
                          stride=2, pad=1, apply_lrelu=True)
    # final_conv1: 3x3, stride 1, pad 1, no bias, no activation.
    src = conv2d_pallas(x, params["w_src"], None, stride=1, pad=1,
                        apply_lrelu=False)
    # final_conv2: ks x ks, stride 1, pad 0, no bias, no activation.
    cls = conv2d_pallas(x, params["w_cls"], None, stride=1, pad=0,
                        apply_lrelu=False)
    out_src = jnp.transpose(src, (0, 3, 1, 2))          # [B, 1, H', W']
    # final_conv2 covers the full spatial extent -> OH = OW = 1.
    assert cls.shape[1] == 1 and cls.shape[2] == 1
    out_cls = cls.reshape(cls.shape[0], cls.shape[3])   # [B, c_dim]
    return out_src, out_cls


def _ref_conv(x_nchw, w4d, b, stride, pad, lrelu):
    w_oihw = jnp.transpose(w4d, (3, 2, 0, 1))
    y = jax.lax.conv_general_dilated(
        x_nchw, w_oihw, (stride, stride), [(pad, pad), (pad, pad)],
        dimension_numbers=("NCHW", "OIHW", "NCHW"),
        precision=jax.lax.Precision.HIGHEST)
    if b is not None:
        y = y + b.reshape(1, -1, 1, 1)
    if lrelu:
        y = jnp.where(y >= 0, y, 0.01 * y)
    return y


def reference_forward(x_nchw, params):
    x = x_nchw
    for layer in params["body"]:
        x = _ref_conv(x, layer["w"], layer["b"], 2, 1, True)
    out_src = _ref_conv(x, params["w_src"], None, 1, 1, False)
    cls = _ref_conv(x, params["w_cls"], None, 1, 0, False)
    return out_src, cls.reshape(cls.shape[0], cls.shape[1])


# --------------------------------------------------------------------------
if __name__ == "__main__":
    # Small-shape configuration consistent with the module's structure:
    # img_size=16, num_feature=8, num_repeat=3, c_dim=5, batch=2.
    img_size, num_feature, num_repeat, c_dim, batch = 16, 8, 3, 5, 2

    key = jax.random.PRNGKey(0)
    k_params, k_x = jax.random.split(key)
    params = make_discriminator_params(k_params, img_size, num_feature,
                                       num_repeat, c_dim)
    x = jax.random.normal(k_x, (batch, 3, img_size, img_size), jnp.float32)

    fwd = jax.jit(discriminator_forward)
    out_src, out_cls = jax.block_until_ready(fwd(x, params))

    # Sanity: shapes match PyTorch semantics.
    final_spatial = img_size // (2 ** num_repeat)
    assert out_src.shape == (batch, 1, final_spatial, final_spatial), out_src.shape
    assert out_cls.shape == (batch, c_dim), out_cls.shape

    # Numerical check against XLA's f32 conv (bf16 kernel inputs, f32 accum).
    ref_src, ref_cls = reference_forward(x, params)
    assert jnp.allclose(out_src, ref_src, rtol=1e-2, atol=1e-2), \
        float(jnp.max(jnp.abs(out_src - ref_src)))
    assert jnp.allclose(out_cls, ref_cls, rtol=1e-2, atol=1e-2), \
        float(jnp.max(jnp.abs(out_cls - ref_cls)))

    print("KERNEL_OK")
</pallas_src>

<mosaic_0001>
module attributes {stable_mosaic.version = 11 : i64} {
  func.func @_conv_matmul_kernel(%arg0: i32, %arg1: i32, %arg2: memref<128x128xbf16, #tpu.memory_space<vmem>>, %arg3: memref<128x128xbf16, #tpu.memory_space<vmem>>, %arg4: memref<1x128xf32, #tpu.memory_space<vmem>>, %arg5: memref<128x128xf32, #tpu.memory_space<vmem>>, %arg6: memref<128x128xf32, #tpu.memory_space<vmem>>) attributes {dimension_semantics = [#tpu.dimension_semantics<parallel>, #tpu.dimension_semantics<arbitrary>], iteration_bounds = array<i64: 1, 1>, scalar_prefetch = 0 : i64, scratch_operands = 1 : i64, tpu.core_type = #tpu.core_type<tc>, window_params = [{transform_indices = @transform_0, window_bounds = array<i64: 128, 128>}, {transform_indices = @transform_1, window_bounds = array<i64: 128, 128>}, {pipeline_mode = #tpu.pipeline_mode<synchronous>, transform_indices = @transform_2, window_bounds = array<i64: 1, 128>}, {transform_indices = @transform_3, window_bounds = array<i64: 128, 128>}]} {
    %c0_i32 = arith.constant 0 : i32
    %0 = arith.cmpi eq, %arg1, %c0_i32 : i32
    %1 = arith.extui %0 : i1 to i32
    %c0_i32_0 = arith.constant 0 : i32
    %2 = arith.cmpi ne, %1, %c0_i32_0 : i32
    scf.if %2 {
      %cst_10 = arith.constant 0.000000e+00 : f32
      %12 = vector.broadcast %cst_10 : f32 to vector<128x128xf32>
      %c0_11 = arith.constant 0 : index
      %c0_12 = arith.constant 0 : index
      %13 = vector.load %arg6[%c0_11, %c0_12] : memref<128x128xf32, #tpu.memory_space<vmem>>, vector<128x128xf32>
      tpu.vector_store %arg6[%c0_11, %c0_12], %12 {strides = array<i32>} : memref<128x128xf32, #tpu.memory_space<vmem>>, vector<128x128xf32>,
    } else {
    }
    %c0 = arith.constant 0 : index
    %c0_1 = arith.constant 0 : index
    %3 = vector.load %arg6[%c0, %c0_1] : memref<128x128xf32, #tpu.memory_space<vmem>>, vector<128x128xf32>
    %c0_2 = arith.constant 0 : index
    %c0_3 = arith.constant 0 : index
    %4 = vector.load %arg2[%c0_2, %c0_3] : memref<128x128xbf16, #tpu.memory_space<vmem>>, vector<128x128xbf16>
    %c0_4 = arith.constant 0 : index
    %c0_5 = arith.constant 0 : index
    %5 = vector.load %arg3[%c0_4, %c0_5] : memref<128x128xbf16, #tpu.memory_space<vmem>>, vector<128x128xbf16>
    %cst = arith.constant dense<0.000000e+00> : vector<128x128xf32>
    %6 = tpu.matmul %4, %5, %cst {dimension_numbers = #tpu.dot_dimension_numbers<[1], [0], [0], [1], [0, 0, 1, 1], [], []>} : vector<128x128xbf16>, vector<128x128xbf16>, vector<128x128xf32> -> vector<128x128xf32>
    %7 = arith.addf %3, %6 : vector<128x128xf32>
    %c0_6 = arith.constant 0 : index
    %c0_7 = arith.constant 0 : index
    %8 = vector.load %arg6[%c0_6, %c0_7] : memref<128x128xf32, #tpu.memory_space<vmem>>, vector<128x128xf32>
    tpu.vector_store %arg6[%c0_6, %c0_7], %7 {strides = array<i32>} : memref<128x128xf32, #tpu.memory_space<vmem>>, vector<128x128xf32>,
    %c0_i32_8 = arith.constant 0 : i32
    %9 = arith.cmpi eq, %arg1, %c0_i32_8 : i32
    %10 = arith.extui %9 : i1 to i32
    %c0_i32_9 = arith.constant 0 : i32
    %11 = arith.cmpi ne, %10, %c0_i32_9 : i32
    scf.if %11 {
      %c0_10 = arith.constant 0 : index
      %c0_11 = arith.constant 0 : index
      %12 = vector.load %arg6[%c0_10, %c0_11] : memref<128x128xf32, #tpu.memory_space<vmem>>, vector<128x128xf32>
      %c0_12 = arith.constant 0 : index
      %c0_13 = arith.constant 0 : index
      %13 = vector.load %arg4[%c0_12, %c0_13] : memref<1x128xf32, #tpu.memory_space<vmem>>, vector<1x128xf32>
      %14 = vector.broadcast %13 : vector<1x128xf32> to vector<128x128xf32>
      %15 = arith.addf %12, %14 : vector<128x128xf32>
      %cst_14 = arith.constant 0.000000e+00 : f32
      %16 = vector.broadcast %cst_14 : f32 to vector<128x128xf32>
      %17 = arith.cmpf oge, %15, %16 : vector<128x128xf32>
      %cst_15 = arith.constant 0.00999999977 : f32
      %18 = vector.broadcast %cst_15 : f32 to vector<128x128xf32>
      %19 = arith.mulf %18, %15 : vector<128x128xf32>
      %20 = arith.select %17, %15, %19 : vector<128x128xi1>, vector<128x128xf32>
      %c0_16 = arith.constant 0 : index
      %c0_17 = arith.constant 0 : index
      %21 = vector.load %arg5[%c0_16, %c0_17] : memref<128x128xf32, #tpu.memory_space<vmem>>, vector<128x128xf32>
      tpu.vector_store %arg5[%c0_16, %c0_17], %20 {strides = array<i32>} : memref<128x128xf32, #tpu.memory_space<vmem>>, vector<128x128xf32>,
    } else {
    }
    return
  }
  func.func @transform_0(%arg0: i32, %arg1: i32) -> (i32, i32) {
    %c0_i32 = arith.constant 0 : i32
    return %arg0, %arg1 : i32, i32
  }
  func.func @transform_1(%arg0: i32, %arg1: i32) -> (i32, i32) {
    %c0_i32 = arith.constant 0 : i32
    %c0_i32_0 = arith.constant 0 : i32
    return %arg1, %c0_i32 : i32, i32
  }
  func.func @transform_2(%arg0: i32, %arg1: i32) -> (i32, i32) {
    %c0_i32 = arith.constant 0 : i32
    %c0_i32_0 = arith.constant 0 : i32
    %c0_i32_1 = arith.constant 0 : i32
    return %c0_i32, %c0_i32_0 : i32, i32
  }
  func.func @transform_3(%arg0: i32, %arg1: i32) -> (i32, i32) {
    %c0_i32 = arith.constant 0 : i32
    %c0_i32_0 = arith.constant 0 : i32
    return %arg0, %c0_i32 : i32, i32
  }
}

module attributes {stable_mosaic.version = 11 : i64} {
  func.func @_conv_matmul_kernel(%arg0: i32, %arg1: i32, %arg2: memref<32x128xbf16, #tpu.memory_space<vmem>>, %arg3: memref<128x128xbf16, #tpu.memory_space<vmem>>, %arg4: memref<1x128xf32, #tpu.memory_space<vmem>>, %arg5: memref<32x128xf32, #tpu.memory_space<vmem>>, %arg6: memref<32x128xf32, #tpu.memory_space<vmem>>) attributes {dimension_semantics = [#tpu.dimension_semantics<parallel>, #tpu.dimension_semantics<arbitrary>], iteration_bounds = array<i64: 1, 1>, scalar_prefetch = 0 : i64, scratch_operands = 1 : i64, tpu.core_type = #tpu.core_type<tc>, window_params = [{transform_indices = @transform_0, window_bounds = array<i64: 32, 128>}, {transform_indices = @transform_1, window_bounds = array<i64: 128, 128>}, {pipeline_mode = #tpu.pipeline_mode<synchronous>, transform_indices = @transform_2, window_bounds = array<i64: 1, 128>}, {transform_indices = @transform_3, window_bounds = array<i64: 32, 128>}]} {
    %c0_i32 = arith.constant 0 : i32
    %0 = arith.cmpi eq, %arg1, %c0_i32 : i32
    %1 = arith.extui %0 : i1 to i32
    %c0_i32_0 = arith.constant 0 : i32
    %2 = arith.cmpi ne, %1, %c0_i32_0 : i32
    scf.if %2 {
      %cst_10 = arith.constant 0.000000e+00 : f32
      %12 = vector.broadcast %cst_10 : f32 to vector<32x128xf32>
      %c0_11 = arith.constant 0 : index
      %c0_12 = arith.constant 0 : index
      %13 = vector.load %arg6[%c0_11, %c0_12] : memref<32x128xf32, #tpu.memory_space<vmem>>, vector<32x128xf32>
      tpu.vector_store %arg6[%c0_11, %c0_12], %12 {strides = array<i32>} : memref<32x128xf32, #tpu.memory_space<vmem>>, vector<32x128xf32>,
    } else {
    }
    %c0 = arith.constant 0 : index
    %c0_1 = arith.constant 0 : index
    %3 = vector.load %arg6[%c0, %c0_1] : memref<32x128xf32, #tpu.memory_space<vmem>>, vector<32x128xf32>
    %c0_2 = arith.constant 0 : index
    %c0_3 = arith.constant 0 : index
    %4 = vector.load %arg2[%c0_2, %c0_3] : memref<32x128xbf16, #tpu.memory_space<vmem>>, vector<32x128xbf16>
    %c0_4 = arith.constant 0 : index
    %c0_5 = arith.constant 0 : index
    %5 = vector.load %arg3[%c0_4, %c0_5] : memref<128x128xbf16, #tpu.memory_space<vmem>>, vector<128x128xbf16>
    %cst = arith.constant dense<0.000000e+00> : vector<32x128xf32>
    %6 = tpu.matmul %4, %5, %cst {dimension_numbers = #tpu.dot_dimension_numbers<[1], [0], [0], [1], [0, 0, 1, 1], [], []>} : vector<32x128xbf16>, vector<128x128xbf16>, vector<32x128xf32> -> vector<32x128xf32>
    %7 = arith.addf %3, %6 : vector<32x128xf32>
    %c0_6 = arith.constant 0 : index
    %c0_7 = arith.constant 0 : index
    %8 = vector.load %arg6[%c0_6, %c0_7] : memref<32x128xf32, #tpu.memory_space<vmem>>, vector<32x128xf32>
    tpu.vector_store %arg6[%c0_6, %c0_7], %7 {strides = array<i32>} : memref<32x128xf32, #tpu.memory_space<vmem>>, vector<32x128xf32>,
    %c0_i32_8 = arith.constant 0 : i32
    %9 = arith.cmpi eq, %arg1, %c0_i32_8 : i32
    %10 = arith.extui %9 : i1 to i32
    %c0_i32_9 = arith.constant 0 : i32
    %11 = arith.cmpi ne, %10, %c0_i32_9 : i32
    scf.if %11 {
      %c0_10 = arith.constant 0 : index
      %c0_11 = arith.constant 0 : index
      %12 = vector.load %arg6[%c0_10, %c0_11] : memref<32x128xf32, #tpu.memory_space<vmem>>, vector<32x128xf32>
      %c0_12 = arith.constant 0 : index
      %c0_13 = arith.constant 0 : index
      %13 = vector.load %arg4[%c0_12, %c0_13] : memref<1x128xf32, #tpu.memory_space<vmem>>, vector<1x128xf32>
      %14 = vector.broadcast %13 : vector<1x128xf32> to vector<32x128xf32>
      %15 = arith.addf %12, %14 : vector<32x128xf32>
      %cst_14 = arith.constant 0.000000e+00 : f32
      %16 = vector.broadcast %cst_14 : f32 to vector<32x128xf32>
      %17 = arith.cmpf oge, %15, %16 : vector<32x128xf32>
      %cst_15 = arith.constant 0.00999999977 : f32
      %18 = vector.broadcast %cst_15 : f32 to vector<32x128xf32>
      %19 = arith.mulf %18, %15 : vector<32x128xf32>
      %20 = arith.select %17, %15, %19 : vector<32x128xi1>, vector<32x128xf32>
      %c0_16 = arith.constant 0 : index
      %c0_17 = arith.constant 0 : index
      %21 = vector.load %arg5[%c0_16, %c0_17] : memref<32x128xf32, #tpu.memory_space<vmem>>, vector<32x128xf32>
      tpu.vector_store %arg5[%c0_16, %c0_17], %20 {strides = array<i32>} : memref<32x128xf32, #tpu.memory_space<vmem>>, vector<32x128xf32>,
    } else {
    }
    return
  }
  func.func @transform_0(%arg0: i32, %arg1: i32) -> (i32, i32) {
    %c0_i32 = arith.constant 0 : i32
    return %arg0, %arg1 : i32, i32
  }
  func.func @transform_1(%arg0: i32, %arg1: i32) -> (i32, i32) {
    %c0_i32 = arith.constant 0 : i32
    %c0_i32_0 = arith.constant 0 : i32
    return %arg1, %c0_i32 : i32, i32
  }
  func.func @transform_2(%arg0: i32, %arg1: i32) -> (i32, i32) {
    %c0_i32 = arith.constant 0 : i32
    %c0_i32_0 = arith.constant 0 : i32
    %c0_i32_1 = arith.constant 0 : i32
    return %c0_i32, %c0_i32_0 : i32, i32
  }
  func.func @transform_3(%arg0: i32, %arg1: i32) -> (i32, i32) {
    %c0_i32 = arith.constant 0 : i32
    %c0_i32_0 = arith.constant 0 : i32
    return %arg0, %c0_i32 : i32, i32
  }
}

module attributes {stable_mosaic.version = 11 : i64} {
  func.func @_conv_matmul_kernel(%arg0: i32, %arg1: i32, %arg2: memref<8x256xbf16, #tpu.memory_space<vmem>>, %arg3: memref<256x128xbf16, #tpu.memory_space<vmem>>, %arg4: memref<1x128xf32, #tpu.memory_space<vmem>>, %arg5: memref<8x128xf32, #tpu.memory_space<vmem>>, %arg6: memref<8x128xf32, #tpu.memory_space<vmem>>) attributes {dimension_semantics = [#tpu.dimension_semantics<parallel>, #tpu.dimension_semantics<arbitrary>], iteration_bounds = array<i64: 1, 1>, scalar_prefetch = 0 : i64, scratch_operands = 1 : i64, tpu.core_type = #tpu.core_type<tc>, window_params = [{transform_indices = @transform_0, window_bounds = array<i64: 8, 256>}, {transform_indices = @transform_1, window_bounds = array<i64: 256, 128>}, {pipeline_mode = #tpu.pipeline_mode<synchronous>, transform_indices = @transform_2, window_bounds = array<i64: 1, 128>}, {transform_indices = @transform_3, window_bounds = array<i64: 8, 128>}]} {
    %c0_i32 = arith.constant 0 : i32
    %0 = arith.cmpi eq, %arg1, %c0_i32 : i32
    %1 = arith.extui %0 : i1 to i32
    %c0_i32_0 = arith.constant 0 : i32
    %2 = arith.cmpi ne, %1, %c0_i32_0 : i32
    scf.if %2 {
      %cst_10 = arith.constant 0.000000e+00 : f32
      %12 = vector.broadcast %cst_10 : f32 to vector<8x128xf32>
      %c0_11 = arith.constant 0 : index
      %c0_12 = arith.constant 0 : index
      %13 = vector.load %arg6[%c0_11, %c0_12] : memref<8x128xf32, #tpu.memory_space<vmem>>, vector<8x128xf32>
      tpu.vector_store %arg6[%c0_11, %c0_12], %12 {strides = array<i32>} : memref<8x128xf32, #tpu.memory_space<vmem>>, vector<8x128xf32>,
    } else {
    }
    %c0 = arith.constant 0 : index
    %c0_1 = arith.constant 0 : index
    %3 = vector.load %arg6[%c0, %c0_1] : memref<8x128xf32, #tpu.memory_space<vmem>>, vector<8x128xf32>
    %c0_2 = arith.constant 0 : index
    %c0_3 = arith.constant 0 : index
    %4 = vector.load %arg2[%c0_2, %c0_3] : memref<8x256xbf16, #tpu.memory_space<vmem>>, vector<8x256xbf16>
    %c0_4 = arith.constant 0 : index
    %c0_5 = arith.constant 0 : index
    %5 = vector.load %arg3[%c0_4, %c0_5] : memref<256x128xbf16, #tpu.memory_space<vmem>>, vector<256x128xbf16>
    %cst = arith.constant dense<0.000000e+00> : vector<8x128xf32>
    %6 = tpu.matmul %4, %5, %cst {dimension_numbers = #tpu.dot_dimension_numbers<[1], [0], [0], [1], [0, 0, 1, 1], [], []>} : vector<8x256xbf16>, vector<256x128xbf16>, vector<8x128xf32> -> vector<8x128xf32>
    %7 = arith.addf %3, %6 : vector<8x128xf32>
    %c0_6 = arith.constant 0 : index
    %c0_7 = arith.constant 0 : index
    %8 = vector.load %arg6[%c0_6, %c0_7] : memref<8x128xf32, #tpu.memory_space<vmem>>, vector<8x128xf32>
    tpu.vector_store %arg6[%c0_6, %c0_7], %7 {strides = array<i32>} : memref<8x128xf32, #tpu.memory_space<vmem>>, vector<8x128xf32>,
    %c0_i32_8 = arith.constant 0 : i32
    %9 = arith.cmpi eq, %arg1, %c0_i32_8 : i32
    %10 = arith.extui %9 : i1 to i32
    %c0_i32_9 = arith.constant 0 : i32
    %11 = arith.cmpi ne, %10, %c0_i32_9 : i32
    scf.if %11 {
      %c0_10 = arith.constant 0 : index
      %c0_11 = arith.constant 0 : index
      %12 = vector.load %arg6[%c0_10, %c0_11] : memref<8x128xf32, #tpu.memory_space<vmem>>, vector<8x128xf32>
      %c0_12 = arith.constant 0 : index
      %c0_13 = arith.constant 0 : index
      %13 = vector.load %arg4[%c0_12, %c0_13] : memref<1x128xf32, #tpu.memory_space<vmem>>, vector<1x128xf32>
      %14 = vector.broadcast %13 : vector<1x128xf32> to vector<8x128xf32>
      %15 = arith.addf %12, %14 : vector<8x128xf32>
      %cst_14 = arith.constant 0.000000e+00 : f32
      %16 = vector.broadcast %cst_14 : f32 to vector<8x128xf32>
      %17 = arith.cmpf oge, %15, %16 : vector<8x128xf32>
      %cst_15 = arith.constant 0.00999999977 : f32
      %18 = vector.broadcast %cst_15 : f32 to vector<8x128xf32>
      %19 = arith.mulf %18, %15 : vector<8x128xf32>
      %20 = arith.select %17, %15, %19 : vector<8x128xi1>, vector<8x128xf32>
      %c0_16 = arith.constant 0 : index
      %c0_17 = arith.constant 0 : index
      %21 = vector.load %arg5[%c0_16, %c0_17] : memref<8x128xf32, #tpu.memory_space<vmem>>, vector<8x128xf32>
      tpu.vector_store %arg5[%c0_16, %c0_17], %20 {strides = array<i32>} : memref<8x128xf32, #tpu.memory_space<vmem>>, vector<8x128xf32>,
    } else {
    }
    return
  }
  func.func @transform_0(%arg0: i32, %arg1: i32) -> (i32, i32) {
    %c0_i32 = arith.constant 0 : i32
    return %arg0, %arg1 : i32, i32
  }
  func.func @transform_1(%arg0: i32, %arg1: i32) -> (i32, i32) {
    %c0_i32 = arith.constant 0 : i32
    %c0_i32_0 = arith.constant 0 : i32
    return %arg1, %c0_i32 : i32, i32
  }
  func.func @transform_2(%arg0: i32, %arg1: i32) -> (i32, i32) {
    %c0_i32 = arith.constant 0 : i32
    %c0_i32_0 = arith.constant 0 : i32
    %c0_i32_1 = arith.constant 0 : i32
    return %c0_i32, %c0_i32_0 : i32, i32
  }
  func.func @transform_3(%arg0: i32, %arg1: i32) -> (i32, i32) {
    %c0_i32 = arith.constant 0 : i32
    %c0_i32_0 = arith.constant 0 : i32
    return %arg0, %c0_i32 : i32, i32
  }
}

module attributes {stable_mosaic.version = 11 : i64} {
  func.func @_conv_matmul_kernel(%arg0: i32, %arg1: i32, %arg2: memref<8x384xbf16, #tpu.memory_space<vmem>>, %arg3: memref<384x128xbf16, #tpu.memory_space<vmem>>, %arg4: memref<8x128xf32, #tpu.memory_space<vmem>>, %arg5: memref<8x128xf32, #tpu.memory_space<vmem>>) attributes {dimension_semantics = [#tpu.dimension_semantics<parallel>, #tpu.dimension_semantics<arbitrary>], iteration_bounds = array<i64: 1, 1>, scalar_prefetch = 0 : i64, scratch_operands = 1 : i64, tpu.core_type = #tpu.core_type<tc>, window_params = [{transform_indices = @transform_0, window_bounds = array<i64: 8, 384>}, {transform_indices = @transform_1, window_bounds = array<i64: 384, 128>}, {transform_indices = @transform_2, window_bounds = array<i64: 8, 128>}]} {
    %c0_i32 = arith.constant 0 : i32
    %0 = arith.cmpi eq, %arg1, %c0_i32 : i32
    %1 = arith.extui %0 : i1 to i32
    %c0_i32_0 = arith.constant 0 : i32
    %2 = arith.cmpi ne, %1, %c0_i32_0 : i32
    scf.if %2 {
      %cst_10 = arith.constant 0.000000e+00 : f32
      %12 = vector.broadcast %cst_10 : f32 to vector<8x128xf32>
      %c0_11 = arith.constant 0 : index
      %c0_12 = arith.constant 0 : index
      %13 = vector.load %arg5[%c0_11, %c0_12] : memref<8x128xf32, #tpu.memory_space<vmem>>, vector<8x128xf32>
      tpu.vector_store %arg5[%c0_11, %c0_12], %12 {strides = array<i32>} : memref<8x128xf32, #tpu.memory_space<vmem>>, vector<8x128xf32>,
    } else {
    }
    %c0 = arith.constant 0 : index
    %c0_1 = arith.constant 0 : index
    %3 = vector.load %arg5[%c0, %c0_1] : memref<8x128xf32, #tpu.memory_space<vmem>>, vector<8x128xf32>
    %c0_2 = arith.constant 0 : index
    %c0_3 = arith.constant 0 : index
    %4 = vector.load %arg2[%c0_2, %c0_3] : memref<8x384xbf16, #tpu.memory_space<vmem>>, vector<8x384xbf16>
    %c0_4 = arith.constant 0 : index
    %c0_5 = arith.constant 0 : index
    %5 = vector.load %arg3[%c0_4, %c0_5] : memref<384x128xbf16, #tpu.memory_space<vmem>>, vector<384x128xbf16>
    %cst = arith.constant dense<0.000000e+00> : vector<8x128xf32>
    %6 = tpu.matmul %4, %5, %cst {dimension_numbers = #tpu.dot_dimension_numbers<[1], [0], [0], [1], [0, 0, 1, 1], [], []>} : vector<8x384xbf16>, vector<384x128xbf16>, vector<8x128xf32> -> vector<8x128xf32>
    %7 = arith.addf %3, %6 : vector<8x128xf32>
    %c0_6 = arith.constant 0 : index
    %c0_7 = arith.constant 0 : index
    %8 = vector.load %arg5[%c0_6, %c0_7] : memref<8x128xf32, #tpu.memory_space<vmem>>, vector<8x128xf32>
    tpu.vector_store %arg5[%c0_6, %c0_7], %7 {strides = array<i32>} : memref<8x128xf32, #tpu.memory_space<vmem>>, vector<8x128xf32>,
    %c0_i32_8 = arith.constant 0 : i32
    %9 = arith.cmpi eq, %arg1, %c0_i32_8 : i32
    %10 = arith.extui %9 : i1 to i32
    %c0_i32_9 = arith.constant 0 : i32
    %11 = arith.cmpi ne, %10, %c0_i32_9 : i32
    scf.if %11 {
      %c0_10 = arith.constant 0 : index
      %c0_11 = arith.constant 0 : index
      %12 = vector.load %arg5[%c0_10, %c0_11] : memref<8x128xf32, #tpu.memory_space<vmem>>, vector<8x128xf32>
      %c0_12 = arith.constant 0 : index
      %c0_13 = arith.constant 0 : index
      %13 = vector.load %arg4[%c0_12, %c0_13] : memref<8x128xf32, #tpu.memory_space<vmem>>, vector<8x128xf32>
      tpu.vector_store %arg4[%c0_12, %c0_13], %12 {strides = array<i32>} : memref<8x128xf32, #tpu.memory_space<vmem>>, vector<8x128xf32>,
    } else {
    }
    return
  }
  func.func @transform_0(%arg0: i32, %arg1: i32) -> (i32, i32) {
    %c0_i32 = arith.constant 0 : i32
    return %arg0, %arg1 : i32, i32
  }
  func.func @transform_1(%arg0: i32, %arg1: i32) -> (i32, i32) {
    %c0_i32 = arith.constant 0 : i32
    %c0_i32_0 = arith.constant 0 : i32
    return %arg1, %c0_i32 : i32, i32
  }
  func.func @transform_2(%arg0: i32, %arg1: i32) -> (i32, i32) {
    %c0_i32 = arith.constant 0 : i32
    %c0_i32_0 = arith.constant 0 : i32
    return %arg0, %c0_i32 : i32, i32
  }
}

module attributes {stable_mosaic.version = 11 : i64} {
  func.func @_conv_matmul_kernel(%arg0: i32, %arg1: i32, %arg2: memref<8x128xbf16, #tpu.memory_space<vmem>>, %arg3: memref<128x128xbf16, #tpu.memory_space<vmem>>, %arg4: memref<8x128xf32, #tpu.memory_space<vmem>>, %arg5: memref<8x128xf32, #tpu.memory_space<vmem>>) attributes {dimension_semantics = [#tpu.dimension_semantics<parallel>, #tpu.dimension_semantics<arbitrary>], iteration_bounds = array<i64: 1, 1>, scalar_prefetch = 0 : i64, scratch_operands = 1 : i64, tpu.core_type = #tpu.core_type<tc>, window_params = [{transform_indices = @transform_0, window_bounds = array<i64: 8, 128>}, {transform_indices = @transform_1, window_bounds = array<i64: 128, 128>}, {transform_indices = @transform_2, window_bounds = array<i64: 8, 128>}]} {
    %c0_i32 = arith.constant 0 : i32
    %0 = arith.cmpi eq, %arg1, %c0_i32 : i32
    %1 = arith.extui %0 : i1 to i32
    %c0_i32_0 = arith.constant 0 : i32
    %2 = arith.cmpi ne, %1, %c0_i32_0 : i32
    scf.if %2 {
      %cst_10 = arith.constant 0.000000e+00 : f32
      %12 = vector.broadcast %cst_10 : f32 to vector<8x128xf32>
      %c0_11 = arith.constant 0 : index
      %c0_12 = arith.constant 0 : index
      %13 = vector.load %arg5[%c0_11, %c0_12] : memref<8x128xf32, #tpu.memory_space<vmem>>, vector<8x128xf32>
      tpu.vector_store %arg5[%c0_11, %c0_12], %12 {strides = array<i32>} : memref<8x128xf32, #tpu.memory_space<vmem>>, vector<8x128xf32>,
    } else {
    }
    %c0 = arith.constant 0 : index
    %c0_1 = arith.constant 0 : index
    %3 = vector.load %arg5[%c0, %c0_1] : memref<8x128xf32, #tpu.memory_space<vmem>>, vector<8x128xf32>
    %c0_2 = arith.constant 0 : index
    %c0_3 = arith.constant 0 : index
    %4 = vector.load %arg2[%c0_2, %c0_3] : memref<8x128xbf16, #tpu.memory_space<vmem>>, vector<8x128xbf16>
    %c0_4 = arith.constant 0 : index
    %c0_5 = arith.constant 0 : index
    %5 = vector.load %arg3[%c0_4, %c0_5] : memref<128x128xbf16, #tpu.memory_space<vmem>>, vector<128x128xbf16>
    %cst = arith.constant dense<0.000000e+00> : vector<8x128xf32>
    %6 = tpu.matmul %4, %5, %cst {dimension_numbers = #tpu.dot_dimension_numbers<[1], [0], [0], [1], [0, 0, 1, 1], [], []>} : vector<8x128xbf16>, vector<128x128xbf16>, vector<8x128xf32> -> vector<8x128xf32>
    %7 = arith.addf %3, %6 : vector<8x128xf32>
    %c0_6 = arith.constant 0 : index
    %c0_7 = arith.constant 0 : index
    %8 = vector.load %arg5[%c0_6, %c0_7] : memref<8x128xf32, #tpu.memory_space<vmem>>, vector<8x128xf32>
    tpu.vector_store %arg5[%c0_6, %c0_7], %7 {strides = array<i32>} : memref<8x128xf32, #tpu.memory_space<vmem>>, vector<8x128xf32>,
    %c0_i32_8 = arith.constant 0 : i32
    %9 = arith.cmpi eq, %arg1, %c0_i32_8 : i32
    %10 = arith.extui %9 : i1 to i32
    %c0_i32_9 = arith.constant 0 : i32
    %11 = arith.cmpi ne, %10, %c0_i32_9 : i32
    scf.if %11 {
      %c0_10 = arith.constant 0 : index
      %c0_11 = arith.constant 0 : index
      %12 = vector.load %arg5[%c0_10, %c0_11] : memref<8x128xf32, #tpu.memory_space<vmem>>, vector<8x128xf32>
      %c0_12 = arith.constant 0 : index
      %c0_13 = arith.constant 0 : index
      %13 = vector.load %arg4[%c0_12, %c0_13] : memref<8x128xf32, #tpu.memory_space<vmem>>, vector<8x128xf32>
      tpu.vector_store %arg4[%c0_12, %c0_13], %12 {strides = array<i32>} : memref<8x128xf32, #tpu.memory_space<vmem>>, vector<8x128xf32>,
    } else {
    }
    return
  }
  func.func @transform_0(%arg0: i32, %arg1: i32) -> (i32, i32) {
    %c0_i32 = arith.constant 0 : i32
    return %arg0, %arg1 : i32, i32
  }
  func.func @transform_1(%arg0: i32, %arg1: i32) -> (i32, i32) {
    %c0_i32 = arith.constant 0 : i32
    %c0_i32_0 = arith.constant 0 : i32
    return %arg1, %c0_i32 : i32, i32
  }
  func.func @transform_2(%arg0: i32, %arg1: i32) -> (i32, i32) {
    %c0_i32 = arith.constant 0 : i32
    %c0_i32_0 = arith.constant 0 : i32
    return %arg0, %c0_i32 : i32, i32
  }
}

</mosaic_0001>

<llo_original>
// kernel: discriminator_forward.5
$region0: #{discriminator_forward.5}
  #allocation0 [shape = 'u32[]', space=smem, size = 0x4, offset = 0x4, fixed_abs, tag = 'smem constant byte address 0x4 - core index']
  #allocation1 [shape = 'u32[144,128]{1,0:T(1,128)}', space=vmem, size = 0x12000, scoped, tag = 'internal scratch']
  #allocation2 [shape = 'f32[128,128]{1,0:T(8,128)}', space=vmem, size = 0x10000, scoped, tag = 'scratch operand']
  %s0 = inlined_call_operand.vmem [shape: bf16[128,128], index: 0, kind: input, shape index: {}]
  %s1 = inlined_call_operand.vmem [shape: bf16[128,128], index: 1, kind: input, shape index: {}]
  %s2 = inlined_call_operand.vmem [shape: f32[1,128], index: 2, kind: input, shape index: {}]
  %s3 = inlined_call_operand.vmem [shape: f32[128,128], index: 3, kind: output, shape index: {}]
  %s4 = sld [smem:[#allocation0]]
  $region30: #{discriminator_forward.5} parent=0
    _
  %s6 = ssub.s32 1, %s4
  %s7 = scalar_select 0, %s6, %s4
  // Predicated region
  $region2: #{discriminator_forward.5} parent=0 // pred_check
    _
  $region3: #{discriminator_forward.5} parent=0 // pred_check_branch
    %9 = sbr.rel (0) target = $region5
  $region4: #{discriminator_forward.5} parent=0 // pred_region
    _
  $region5: #{discriminator_forward.5} parent=0 // pred_fallthru
    _
  // Predicated region
  $region6: #{discriminator_forward.5} parent=0 // pred_check
    _
  $region7: #{discriminator_forward.5} parent=0 // pred_check_branch
    %11 = sbr.rel (0) target = $region9
  $region8: #{discriminator_forward.5} parent=0 // pred_region
    _
  $region9: #{discriminator_forward.5} parent=0 // pred_fallthru
    _
  // Predicated region
  $region10: #{discriminator_forward.5} parent=0 // pred_check
    _
  $region11: #{discriminator_forward.5} parent=0 // pred_check_branch
    %13 = sbr.rel (0) target = $region13
  $region12: #{discriminator_forward.5} parent=0 // pred_region
    _
  $region13: #{discriminator_forward.5} parent=0 // pred_fallthru
    _
  %p15 = scmp.eq.s32.totalorder 0, 0
  // Predicated region
  $region14: #{discriminator_forward.5} parent=0 // pred_check
    %p16 = pneg %p15
  $region15: #{discriminator_forward.5} parent=0 // pred_check_branch
    %18 = sbr.rel (%p16) target = $region17
  $region16: #{discriminator_forward.5} parent=0 // pred_region
    %19 = vst [vmem:[#allocation2] sm:$0xff] 0.0
    %20 = vst [vmem:[#allocation2 + $0x8] sm:$0xff] 0.0
    %21 = vst [vmem:[#allocation2 + $0x10] sm:$0xff] 0.0
    %22 = vst [vmem:[#allocation2 + $0x18] sm:$0xff] 0.0
    %23 = vst [vmem:[#allocation2 + $0x20] sm:$0xff] 0.0
    %24 = vst [vmem:[#allocation2 + $0x28] sm:$0xff] 0.0
    %25 = vst [vmem:[#allocation2 + $0x30] sm:$0xff] 0.0
    %26 = vst [vmem:[#allocation2 + $0x38] sm:$0xff] 0.0
    %27 = vst [vmem:[#allocation2 + $0x40] sm:$0xff] 0.0
    %28 = vst [vmem:[#allocation2 + $0x48] sm:$0xff] 0.0
    %29 = vst [vmem:[#allocation2 + $0x50] sm:$0xff] 0.0
    %30 = vst [vmem:[#allocation2 + $0x58] sm:$0xff] 0.0
    %31 = vst [vmem:[#allocation2 + $0x60] sm:$0xff] 0.0
    %32 = vst [vmem:[#allocation2 + $0x68] sm:$0xff] 0.0
    %33 = vst [vmem:[#allocation2 + $0x70] sm:$0xff] 0.0
    %34 = vst [vmem:[#allocation2 + $0x78] sm:$0xff] 0.0
  $region17: #{discriminator_forward.5} parent=0 // pred_fallthru
    _
  %v35 = vld [vmem:[#allocation2] sm:$0xff]
  %v36 = vld [vmem:[#allocation2 + $0x8] sm:$0xff]
  %v37 = vld [vmem:[#allocation2 + $0x10] sm:$0xff]
  %v38 = vld [vmem:[#allocation2 + $0x18] sm:$0xff]
  %v39 = vld [vmem:[#allocation2 + $0x20] sm:$0xff]
  %v40 = vld [vmem:[#allocation2 + $0x28] sm:$0xff]
  %v41 = vld [vmem:[#allocation2 + $0x30] sm:$0xff]
  %v42 = vld [vmem:[#allocation2 + $0x38] sm:$0xff]
  %v43 = vld [vmem:[#allocation2 + $0x40] sm:$0xff]
  %v44 = vld [vmem:[#allocation2 + $0x48] sm:$0xff]
  %v45 = vld [vmem:[#allocation2 + $0x50] sm:$0xff]
  %v46 = vld [vmem:[#allocation2 + $0x58] sm:$0xff]
  %v47 = vld [vmem:[#allocation2 + $0x60] sm:$0xff]
  %v48 = vld [vmem:[#allocation2 + $0x68] sm:$0xff]
  %v49 = vld [vmem:[#allocation2 + $0x70] sm:$0xff]
  %v50 = vld [vmem:[#allocation2 + $0x78] sm:$0xff]
  %v51 = vld [vmem:[%s0] sm:$0xf]
  %v52 = vld [vmem:[%s0 + $0x4] sm:$0xf]
  %v53 = vld [vmem:[%s0 + $0x8] sm:$0xf]
  %v54 = vld [vmem:[%s0 + $0xc] sm:$0xf]
  %v55 = vld [vmem:[%s0 + $0x10] sm:$0xf]
  %v56 = vld [vmem:[%s0 + $0x14] sm:$0xf]
  %v57 = vld [vmem:[%s0 + $0x18] sm:$0xf]
  %v58 = vld [vmem:[%s0 + $0x1c] sm:$0xf]
  %v59 = vld [vmem:[%s0 + $0x20] sm:$0xf]
  %v60 = vld [vmem:[%s0 + $0x24] sm:$0xf]
  %v61 = vld [vmem:[%s0 + $0x28] sm:$0xf]
  %v62 = vld [vmem:[%s0 + $0x2c] sm:$0xf]
  %v63 = vld [vmem:[%s0 + $0x30] sm:$0xf]
  %v64 = vld [vmem:[%s0 + $0x34] sm:$0xf]
  %v65 = vld [vmem:[%s0 + $0x38] sm:$0xf]
  %v66 = vld [vmem:[%s0 + $0x3c] sm:$0xf]
  %v67 = vld [vmem:[%s1] sm:$0xf]
  %v68 = vld [vmem:[%s1 + $0x4] sm:$0xf]
  %v69 = vld [vmem:[%s1 + $0x8] sm:$0xf]
  %v70 = vld [vmem:[%s1 + $0xc] sm:$0xf]
  %v71 = vld [vmem:[%s1 + $0x10] sm:$0xf]
  %v72 = vld [vmem:[%s1 + $0x14] sm:$0xf]
  %v73 = vld [vmem:[%s1 + $0x18] sm:$0xf]
  %v74 = vld [vmem:[%s1 + $0x1c] sm:$0xf]
  %v75 = vld [vmem:[%s1 + $0x20] sm:$0xf]
  %v76 = vld [vmem:[%s1 + $0x24] sm:$0xf]
  %v77 = vld [vmem:[%s1 + $0x28] sm:$0xf]
  %v78 = vld [vmem:[%s1 + $0x2c] sm:$0xf]
  %v79 = vld [vmem:[%s1 + $0x30] sm:$0xf]
  %v80 = vld [vmem:[%s1 + $0x34] sm:$0xf]
  %v81 = vld [vmem:[%s1 + $0x38] sm:$0xf]
  %v82 = vld [vmem:[%s1 + $0x3c] sm:$0xf]
  %v99 = vunpack.c.l.b16 %v51
  %v100 = vunpack.c.l.b16 %v52
  %v101 = vunpack.c.l.b16 %v53
  %v102 = vunpack.c.l.b16 %v54
  %v103 = vunpack.c.l.b16 %v55
  %v104 = vunpack.c.l.b16 %v56
  %v105 = vunpack.c.l.b16 %v57
  %v106 = vunpack.c.l.b16 %v58
  %v107 = vunpack.c.l.b16 %v59
  %v108 = vunpack.c.l.b16 %v60
  %v109 = vunpack.c.l.b16 %v61
  %v110 = vunpack.c.l.b16 %v62
  %v111 = vunpack.c.l.b16 %v63
  %v112 = vunpack.c.l.b16 %v64
  %v113 = vunpack.c.l.b16 %v65
  %v114 = vunpack.c.l.b16 %v66
  %v115 = vpack.c.b16 %v100, %v99
  %v116 = vpack.c.b16 %v102, %v101
  %v117 = vpack.c.b16 %v104, %v103
  %v118 = vpack.c.b16 %v106, %v105
  %v119 = vpack.c.b16 %v108, %v107
  %v120 = vpack.c.b16 %v110, %v109
  %v121 = vpack.c.b16 %v112, %v111
  %v122 = vpack.c.b16 %v114, %v113
  %v147 = vunpack.c.l.b16 %v67
  %v148 = vunpack.c.l.b16 %v68
  %v149 = vunpack.c.l.b16 %v69
  %v150 = vunpack.c.l.b16 %v70
  %v151 = vunpack.c.l.b16 %v71
  %v152 = vunpack.c.l.b16 %v72
  %v153 = vunpack.c.l.b16 %v73
  %v154 = vunpack.c.l.b16 %v74
  %v155 = vunpack.c.l.b16 %v75
  %v156 = vunpack.c.l.b16 %v76
  %v157 = vunpack.c.l.b16 %v77
  %v158 = vunpack.c.l.b16 %v78
  %v159 = vunpack.c.l.b16 %v79
  %v160 = vunpack.c.l.b16 %v80
  %v161 = vunpack.c.l.b16 %v81
  %v162 = vunpack.c.l.b16 %v82
  %v163 = vpack.c.b16 %v148, %v147
  %v164 = vpack.c.b16 %v150, %v149
  %v165 = vpack.c.b16 %v152, %v151
  %v166 = vpack.c.b16 %v154, %v153
  %v167 = vpack.c.b16 %v156, %v155
  %v168 = vpack.c.b16 %v158, %v157
  %v169 = vpack.c.b16 %v160, %v159
  %v170 = vpack.c.b16 %v162, %v161
  %179 = vmatprep.subr.bf16.mxu0 0
  %180 = vmatpush1.bf16.msra.mxu0 %v163
  %181 = vmatprep.subr.bf16.mxu0 0
  %182 = vmatpush1.bf16.msra.mxu0 %v164
  %183 = vmatprep.subr.bf16.mxu0 0
  %184 = vmatpush1.bf16.msra.mxu0 %v165
  %185 = vmatprep.subr.bf16.mxu0 0
  %186 = vmatpush1.bf16.msra.mxu0 %v166
  %187 = vmatprep.subr.bf16.mxu0 0
  %188 = vmatpush1.bf16.msra.mxu0 %v167
  %189 = vmatprep.subr.bf16.mxu0 0
  %190 = vmatpush1.bf16.msra.mxu0 %v168
  %191 = vmatprep.subr.bf16.mxu0 0
  %192 = vmatpush1.bf16.msra.mxu0 %v169
  %193 = vmatprep.subr.bf16.mxu0 0
  %194 = vmatpush1.bf16.msra.mxu0 %v170
  %195 = vmatprep.subr.bf16.mxu0 0
  %196 = vmatpush1.bf16.msra.mxu0 0
  %197 = vmatprep.subr.bf16.mxu0 0
  %198 = vmatpush1.bf16.msra.mxu0 0
  %199 = vmatprep.subr.bf16.mxu0 0
  %200 = vmatpush1.bf16.msra.mxu0 0
  %201 = vmatprep.subr.bf16.mxu0 0
  %202 = vmatpush1.bf16.msra.mxu0 0
  %203 = vmatprep.subr.bf16.mxu0 0
  %204 = vmatpush1.bf16.msra.mxu0 0
  %205 = vmatprep.subr.bf16.mxu0 0
  %206 = vmatpush1.bf16.msra.mxu0 0
  %207 = vmatprep.subr.bf16.mxu0 0
  %208 = vmatpush1.bf16.msra.mxu0 0
  %209 = vmatprep.subr.bf16.mxu0 0
  %210 = vmatpush1.bf16.msra.mxu0 0
  %211 = vmatprep.mubr.bf16.mxu0 0
  %212 = vmatmul.mubr.bf16.gmra.mrb[0].mxu0 %v115
  %v213 = vpop.f32.mrb[0].mxu0
  %v214 = vadd.f32 0.0, %v213
  %v215 = vpop.f32.mrb[0].mxu0
  %v216 = vpop.f32.mrb[0].mxu0
  %v217 = vadd.f32 0.0, %v216
  %v218 = vpop.f32.mrb[0].mxu0
  %219 = vmatprep.mubr.bf16.mxu0 0
  %220 = vmatmul.mubr.bf16.gmra.mrb[0].mxu0 %v116
  %v221 = vpop.f32.mrb[0].mxu0
  %v222 = vadd.f32 0.0, %v221
  %v223 = vpop.f32.mrb[0].mxu0
  %v224 = vpop.f32.mrb[0].mxu0
  %v225 = vadd.f32 0.0, %v224
  %v226 = vpop.f32.mrb[0].mxu0
  %227 = vmatprep.mubr.bf16.mxu0 0
  %228 = vmatmul.mubr.bf16.gmra.mrb[0].mxu0 %v117
  %v229 = vpop.f32.mrb[0].mxu0
  %v230 = vadd.f32 0.0, %v229
  %v231 = vpop.f32.mrb[0].mxu0
  %v232 = vpop.f32.mrb[0].mxu0
  %v233 = vadd.f32 0.0, %v232
  %v234 = vpop.f32.mrb[0].mxu0
  %235 = vmatprep.mubr.bf16.mxu0 0
  %236 = vmatmul.mubr.bf16.gmra.mrb[0].mxu0 %v118
  %v237 = vpop.f32.mrb[0].mxu0
  %v238 = vadd.f32 0.0, %v237
  %v239 = vpop.f32.mrb[0].mxu0
  %v240 = vpop.f32.mrb[0].mxu0
  %v241 = vadd.f32 0.0, %v240
  %v242 = vpop.f32.mrb[0].mxu0
  %243 = vmatprep.mubr.bf16.mxu0 0
  %244 = vmatmul.mubr.bf16.gmra.mrb[0].mxu0 %v119
  %v245 = vpop.f32.mrb[0].mxu0
  %v246 = vadd.f32 0.0, %v245
  %v247 = vpop.f32.mrb[0].mxu0
  %v248 = vpop.f32.mrb[0].mxu0
  %v249 = vadd.f32 0.0, %v248
  %v250 = vpop.f32.mrb[0].mxu0
  %251 = vmatprep.mubr.bf16.mxu0 0
  %252 = vmatmul.mubr.bf16.gmra.mrb[0].mxu0 %v120
  %v253 = vpop.f32.mrb[0].mxu0
  %v254 = vadd.f32 0.0, %v253
  %v255 = vpop.f32.mrb[0].mxu0
  %v256 = vpop.f32.mrb[0].mxu0
  %v257 = vadd.f32 0.0, %v256
  %v258 = vpop.f32.mrb[0].mxu0
  %259 = vmatprep.mubr.bf16.mxu0 0
  %260 = vmatmul.mubr.bf16.gmra.mrb[0].mxu0 %v121
  %v261 = vpop.f32.mrb[0].mxu0
  %v262 = vadd.f32 0.0, %v261
  %v263 = vpop.f32.mrb[0].mxu0
  %v264 = vpop.f32.mrb[0].mxu0
  %v265 = vadd.f32 0.0, %v264
  %v266 = vpop.f32.mrb[0].mxu0
  %267 = vmatprep.mubr.bf16.mxu0 0
  %268 = vmatmul.mubr.bf16.gmra.mrb[0].mxu0 %v122
  %v269 = vpop.f32.mrb[0].mxu0
  %v270 = vadd.f32 0.0, %v269
  %v271 = vpop.f32.mrb[0].mxu0
  %v272 = vpop.f32.mrb[0].mxu0
  %v273 = vadd.f32 0.0, %v272
  %v274 = vpop.f32.mrb[0].mxu0
  %275 = vdwg.mxu0
  %v276 = vadd.f32 %v35, %v214
  %v277 = vadd.f32 %v36, %v217
  %v278 = vadd.f32 %v37, %v222
  %v279 = vadd.f32 %v38, %v225
  %v280 = vadd.f32 %v39, %v230
  %v281 = vadd.f32 %v40, %v233
  %v282 = vadd.f32 %v41, %v238
  %v283 = vadd.f32 %v42, %v241
  %v284 = vadd.f32 %v43, %v246
  %v285 = vadd.f32 %v44, %v249
  %v286 = vadd.f32 %v45, %v254
  %v287 = vadd.f32 %v46, %v257
  %v288 = vadd.f32 %v47, %v262
  %v289 = vadd.f32 %v48, %v265
  %v290 = vadd.f32 %v49, %v270
  %v291 = vadd.f32 %v50, %v273
  %292 = vst [vmem:[#allocation2] sm:$0xff] %v276
  %293 = vst [vmem:[#allocation2 + $0x8] sm:$0xff] %v277
  %294 = vst [vmem:[#allocation2 + $0x10] sm:$0xff] %v278
  %295 = vst [vmem:[#allocation2 + $0x18] sm:$0xff] %v279
  %296 = vst [vmem:[#allocation2 + $0x20] sm:$0xff] %v280
  %297 = vst [vmem:[#allocation2 + $0x28] sm:$0xff] %v281
  %298 = vst [vmem:[#allocation2 + $0x30] sm:$0xff] %v282
  %299 = vst [vmem:[#allocation2 + $0x38] sm:$0xff] %v283
  %300 = vst [vmem:[#allocation2 + $0x40] sm:$0xff] %v284
  %301 = vst [vmem:[#allocation2 + $0x48] sm:$0xff] %v285
  %302 = vst [vmem:[#allocation2 + $0x50] sm:$0xff] %v286
  %303 = vst [vmem:[#allocation2 + $0x58] sm:$0xff] %v287
  %304 = vst [vmem:[#allocation2 + $0x60] sm:$0xff] %v288
  %305 = vst [vmem:[#allocation2 + $0x68] sm:$0xff] %v289
  %306 = vst [vmem:[#allocation2 + $0x70] sm:$0xff] %v290
  %307 = vst [vmem:[#allocation2 + $0x78] sm:$0xff] %v291
  // Predicated region
  $region18: #{discriminator_forward.5} parent=0 // pred_check
    %p308 = pneg %p15
  $region19: #{discriminator_forward.5} parent=0 // pred_check_branch
    %310 = sbr.rel (%p308) target = $region21
  $region20: #{discriminator_forward.5} parent=0 // pred_region
    %v311 = vld [vmem:[#allocation2] sm:$0xff]
    %v312 = vld [vmem:[#allocation2 + $0x8] sm:$0xff]
    %v313 = vld [vmem:[#allocation2 + $0x10] sm:$0xff]
    %v314 = vld [vmem:[#allocation2 + $0x18] sm:$0xff]
    %v315 = vld [vmem:[#allocation2 + $0x20] sm:$0xff]
    %v316 = vld [vmem:[#allocation2 + $0x28] sm:$0xff]
    %v317 = vld [vmem:[#allocation2 + $0x30] sm:$0xff]
    %v318 = vld [vmem:[#allocation2 + $0x38] sm:$0xff]
    %v319 = vld [vmem:[#allocation2 + $0x40] sm:$0xff]
    %v320 = vld [vmem:[#allocation2 + $0x48] sm:$0xff]
    %v321 = vld [vmem:[#allocation2 + $0x50] sm:$0xff]
    %v322 = vld [vmem:[#allocation2 + $0x58] sm:$0xff]
    %v323 = vld [vmem:[#allocation2 + $0x60] sm:$0xff]
    %v324 = vld [vmem:[#allocation2 + $0x68] sm:$0xff]
    %v325 = vld [vmem:[#allocation2 + $0x70] sm:$0xff]
    %v326 = vld [vmem:[#allocation2 + $0x78] sm:$0xff]
    %v327 = vld [vmem:[%s2] sm:$0x1]
    %v329 = vlaneseq
    %v330 = vshrl.u32 %v329, 7
    %v331 = vsub.s32 0, %v330
    %v332 = vrot.slane %v327, %v331
    %v334 = vadd.f32 %v311, %v332
    %v335 = vadd.f32 %v312, %v332
    %v336 = vadd.f32 %v313, %v332
    %v337 = vadd.f32 %v314, %v332
    %v338 = vadd.f32 %v315, %v332
    %v339 = vadd.f32 %v316, %v332
    %v340 = vadd.f32 %v317, %v332
    %v341 = vadd.f32 %v318, %v332
    %v342 = vadd.f32 %v319, %v332
    %v343 = vadd.f32 %v320, %v332
    %v344 = vadd.f32 %v321, %v332
    %v345 = vadd.f32 %v322, %v332
    %v346 = vadd.f32 %v323, %v332
    %v347 = vadd.f32 %v324, %v332
    %v348 = vadd.f32 %v325, %v332
    %v349 = vadd.f32 %v326, %v332
    %vm350 = vcmp.ge.f32.partialorder %v334, 0.0
    %vm351 = vcmp.ge.f32.partialorder %v335, 0.0
    %vm352 = vcmp.ge.f32.partialorder %v336, 0.0
    %vm353 = vcmp.ge.f32.partialorder %v337, 0.0
    %vm354 = vcmp.ge.f32.partialorder %v338, 0.0
    %vm355 = vcmp.ge.f32.partialorder %v339, 0.0
    %vm356 = vcmp.ge.f32.partialorder %v340, 0.0
    %vm357 = vcmp.ge.f32.partialorder %v341, 0.0
    %vm358 = vcmp.ge.f32.partialorder %v342, 0.0
    %vm359 = vcmp.ge.f32.partialorder %v343, 0.0
    %vm360 = vcmp.ge.f32.partialorder %v344, 0.0
    %vm361 = vcmp.ge.f32.partialorder %v345, 0.0
    %vm362 = vcmp.ge.f32.partialorder %v346, 0.0
    %vm363 = vcmp.ge.f32.partialorder %v347, 0.0
    %vm364 = vcmp.ge.f32.partialorder %v348, 0.0
    %vm365 = vcmp.ge.f32.partialorder %v349, 0.0
    %v366 = vmul.f32 %v334, 0.01
    %v367 = vmul.f32 %v335, 0.01
    %v368 = vmul.f32 %v336, 0.01
    %v369 = vmul.f32 %v337, 0.01
    %v370 = vmul.f32 %v338, 0.01
    %v371 = vmul.f32 %v339, 0.01
    %v372 = vmul.f32 %v340, 0.01
    %v373 = vmul.f32 %v341, 0.01
    %v374 = vmul.f32 %v342, 0.01
    %v375 = vmul.f32 %v343, 0.01
    %v376 = vmul.f32 %v344, 0.01
    %v377 = vmul.f32 %v345, 0.01
    %v378 = vmul.f32 %v346, 0.01
    %v379 = vmul.f32 %v347, 0.01
    %v380 = vmul.f32 %v348, 0.01
    %v381 = vmul.f32 %v349, 0.01
    %v382 = vsel %vm350, %v334, %v366
    %v383 = vsel %vm351, %v335, %v367
    %v384 = vsel %vm352, %v336, %v368
    %v385 = vsel %vm353, %v337, %v369
    %v386 = vsel %vm354, %v338, %v370
    %v387 = vsel %vm355, %v339, %v371
    %v388 = vsel %vm356, %v340, %v372
    %v389 = vsel %vm357, %v341, %v373
    %v390 = vsel %vm358, %v342, %v374
    %v391 = vsel %vm359, %v343, %v375
    %v392 = vsel %vm360, %v344, %v376
    %v393 = vsel %vm361, %v345, %v377
    %v394 = vsel %vm362, %v346, %v378
    %v395 = vsel %vm363, %v347, %v379
    %v396 = vsel %vm364, %v348, %v380
    %v397 = vsel %vm365, %v349, %v381
    %398 = vst [vmem:[%s3] sm:$0xff] %v382
    %399 = vst [vmem:[%s3 + $0x8] sm:$0xff] %v383
    %400 = vst [vmem:[%s3 + $0x10] sm:$0xff] %v384
    %401 = vst [vmem:[%s3 + $0x18] sm:$0xff] %v385
    %402 = vst [vmem:[%s3 + $0x20] sm:$0xff] %v386
    %403 = vst [vmem:[%s3 + $0x28] sm:$0xff] %v387
    %404 = vst [vmem:[%s3 + $0x30] sm:$0xff] %v388
    %405 = vst [vmem:[%s3 + $0x38] sm:$0xff] %v389
    %406 = vst [vmem:[%s3 + $0x40] sm:$0xff] %v390
    %407 = vst [vmem:[%s3 + $0x48] sm:$0xff] %v391
    %408 = vst [vmem:[%s3 + $0x50] sm:$0xff] %v392
    %409 = vst [vmem:[%s3 + $0x58] sm:$0xff] %v393
    %410 = vst [vmem:[%s3 + $0x60] sm:$0xff] %v394
    %411 = vst [vmem:[%s3 + $0x68] sm:$0xff] %v395
    %412 = vst [vmem:[%s3 + $0x70] sm:$0xff] %v396
    %413 = vst [vmem:[%s3 + $0x78] sm:$0xff] %v397
  $region21: #{discriminator_forward.5} parent=0 // pred_fallthru
    _
  // Predicated region
  $region22: #{discriminator_forward.5} parent=0 // pred_check
    _
  $region23: #{discriminator_forward.5} parent=0 // pred_check_branch
    %415 = sbr.rel (0) target = $region25
  $region24: #{discriminator_forward.5} parent=0 // pred_region
    _
  $region25: #{discriminator_forward.5} parent=0 // pred_fallthru
    _
  // Predicated region
  $region26: #{discriminator_forward.5} parent=0 // pred_check
    _
  $region27: #{discriminator_forward.5} parent=0 // pred_check_branch
    %417 = sbr.rel (0) target = $region29
  $region28: #{discriminator_forward.5} parent=0 // pred_region
    _
  $region29: #{discriminator_forward.5} parent=0 // pred_fallthru
    _

// kernel: discriminator_forward.6
$region0: #{discriminator_forward.6}
  #allocation0 [shape = 'u32[]', space=smem, size = 0x4, offset = 0x4, fixed_abs, tag = 'smem constant byte address 0x4 - core index']
  #allocation1 [shape = 'u32[144,128]{1,0:T(1,128)}', space=vmem, size = 0x12000, scoped, tag = 'internal scratch']
  #allocation2 [shape = 'f32[32,128]{1,0:T(8,128)}', space=vmem, size = 0x4000, scoped, tag = 'scratch operand']
  %s0 = inlined_call_operand.vmem [shape: bf16[32,128], index: 0, kind: input, shape index: {}]
  %s1 = inlined_call_operand.vmem [shape: bf16[128,128], index: 1, kind: input, shape index: {}]
  %s2 = inlined_call_operand.vmem [shape: f32[1,128], index: 2, kind: input, shape index: {}]
  %s3 = inlined_call_operand.vmem [shape: f32[32,128], index: 3, kind: output, shape index: {}]
  %s4 = sld [smem:[#allocation0]]
  $region30: #{discriminator_forward.6} parent=0
    _
  %s6 = ssub.s32 1, %s4
  %s7 = scalar_select 0, %s6, %s4
  // Predicated region
  $region2: #{discriminator_forward.6} parent=0 // pred_check
    _
  $region3: #{discriminator_forward.6} parent=0 // pred_check_branch
    %9 = sbr.rel (0) target = $region5
  $region4: #{discriminator_forward.6} parent=0 // pred_region
    _
  $region5: #{discriminator_forward.6} parent=0 // pred_fallthru
    _
  // Predicated region
  $region6: #{discriminator_forward.6} parent=0 // pred_check
    _
  $region7: #{discriminator_forward.6} parent=0 // pred_check_branch
    %11 = sbr.rel (0) target = $region9
  $region8: #{discriminator_forward.6} parent=0 // pred_region
    _
  $region9: #{discriminator_forward.6} parent=0 // pred_fallthru
    _
  // Predicated region
  $region10: #{discriminator_forward.6} parent=0 // pred_check
    _
  $region11: #{discriminator_forward.6} parent=0 // pred_check_branch
    %13 = sbr.rel (0) target = $region13
  $region12: #{discriminator_forward.6} parent=0 // pred_region
    _
  $region13: #{discriminator_forward.6} parent=0 // pred_fallthru
    _
  %p15 = scmp.eq.s32.totalorder 0, 0
  // Predicated region
  $region14: #{discriminator_forward.6} parent=0 // pred_check
    %p16 = pneg %p15
  $region15: #{discriminator_forward.6} parent=0 // pred_check_branch
    %18 = sbr.rel (%p16) target = $region17
  $region16: #{discriminator_forward.6} parent=0 // pred_region
    %19 = vst [vmem:[#allocation2] sm:$0xff] 0.0
    %20 = vst [vmem:[#allocation2 + $0x8] sm:$0xff] 0.0
    %21 = vst [vmem:[#allocation2 + $0x10] sm:$0xff] 0.0
    %22 = vst [vmem:[#allocation2 + $0x18] sm:$0xff] 0.0
  $region17: #{discriminator_forward.6} parent=0 // pred_fallthru
    _
  %v23 = vld [vmem:[#allocation2] sm:$0xff]
  %v24 = vld [vmem:[#allocation2 + $0x8] sm:$0xff]
  %v25 = vld [vmem:[#allocation2 + $0x10] sm:$0xff]
  %v26 = vld [vmem:[#allocation2 + $0x18] sm:$0xff]
  %v27 = vld [vmem:[%s0] sm:$0xf]
  %v28 = vld [vmem:[%s0 + $0x4] sm:$0xf]
  %v29 = vld [vmem:[%s0 + $0x8] sm:$0xf]
  %v30 = vld [vmem:[%s0 + $0xc] sm:$0xf]
  %v31 = vld [vmem:[%s1] sm:$0xf]
  %v32 = vld [vmem:[%s1 + $0x4] sm:$0xf]
  %v33 = vld [vmem:[%s1 + $0x8] sm:$0xf]
  %v34 = vld [vmem:[%s1 + $0xc] sm:$0xf]
  %v35 = vld [vmem:[%s1 + $0x10] sm:$0xf]
  %v36 = vld [vmem:[%s1 + $0x14] sm:$0xf]
  %v37 = vld [vmem:[%s1 + $0x18] sm:$0xf]
  %v38 = vld [vmem:[%s1 + $0x1c] sm:$0xf]
  %v39 = vld [vmem:[%s1 + $0x20] sm:$0xf]
  %v40 = vld [vmem:[%s1 + $0x24] sm:$0xf]
  %v41 = vld [vmem:[%s1 + $0x28] sm:$0xf]
  %v42 = vld [vmem:[%s1 + $0x2c] sm:$0xf]
  %v43 = vld [vmem:[%s1 + $0x30] sm:$0xf]
  %v44 = vld [vmem:[%s1 + $0x34] sm:$0xf]
  %v45 = vld [vmem:[%s1 + $0x38] sm:$0xf]
  %v46 = vld [vmem:[%s1 + $0x3c] sm:$0xf]
  %v51 = vunpack.c.l.b16 %v27
  %v52 = vunpack.c.l.b16 %v28
  %v53 = vunpack.c.l.b16 %v29
  %v54 = vunpack.c.l.b16 %v30
  %v55 = vpack.c.b16 %v52, %v51
  %v56 = vpack.c.b16 %v54, %v53
  %v75 = vunpack.c.l.b16 %v31
  %v76 = vunpack.c.l.b16 %v32
  %v77 = vunpack.c.l.b16 %v33
  %v78 = vunpack.c.l.b16 %v34
  %v79 = vunpack.c.l.b16 %v35
  %v80 = vunpack.c.l.b16 %v36
  %v81 = vunpack.c.l.b16 %v37
  %v82 = vunpack.c.l.b16 %v38
  %v83 = vunpack.c.l.b16 %v39
  %v84 = vunpack.c.l.b16 %v40
  %v85 = vunpack.c.l.b16 %v41
  %v86 = vunpack.c.l.b16 %v42
  %v87 = vunpack.c.l.b16 %v43
  %v88 = vunpack.c.l.b16 %v44
  %v89 = vunpack.c.l.b16 %v45
  %v90 = vunpack.c.l.b16 %v46
  %v91 = vpack.c.b16 %v76, %v75
  %v92 = vpack.c.b16 %v78, %v77
  %v93 = vpack.c.b16 %v80, %v79
  %v94 = vpack.c.b16 %v82, %v81
  %v95 = vpack.c.b16 %v84, %v83
  %v96 = vpack.c.b16 %v86, %v85
  %v97 = vpack.c.b16 %v88, %v87
  %v98 = vpack.c.b16 %v90, %v89
  %107 = vmatprep.subr.bf16.mxu0 0
  %108 = vmatpush1.bf16.msra.mxu0 %v91
  %109 = vmatprep.subr.bf16.mxu0 0
  %110 = vmatpush1.bf16.msra.mxu0 %v92
  %111 = vmatprep.subr.bf16.mxu0 0
  %112 = vmatpush1.bf16.msra.mxu0 %v93
  %113 = vmatprep.subr.bf16.mxu0 0
  %114 = vmatpush1.bf16.msra.mxu0 %v94
  %115 = vmatprep.subr.bf16.mxu0 0
  %116 = vmatpush1.bf16.msra.mxu0 %v95
  %117 = vmatprep.subr.bf16.mxu0 0
  %118 = vmatpush1.bf16.msra.mxu0 %v96
  %119 = vmatprep.subr.bf16.mxu0 0
  %120 = vmatpush1.bf16.msra.mxu0 %v97
  %121 = vmatprep.subr.bf16.mxu0 0
  %122 = vmatpush1.bf16.msra.mxu0 %v98
  %123 = vmatprep.subr.bf16.mxu0 0
  %124 = vmatpush1.bf16.msra.mxu0 0
  %125 = vmatprep.subr.bf16.mxu0 0
  %126 = vmatpush1.bf16.msra.mxu0 0
  %127 = vmatprep.subr.bf16.mxu0 0
  %128 = vmatpush1.bf16.msra.mxu0 0
  %129 = vmatprep.subr.bf16.mxu0 0
  %130 = vmatpush1.bf16.msra.mxu0 0
  %131 = vmatprep.subr.bf16.mxu0 0
  %132 = vmatpush1.bf16.msra.mxu0 0
  %133 = vmatprep.subr.bf16.mxu0 0
  %134 = vmatpush1.bf16.msra.mxu0 0
  %135 = vmatprep.subr.bf16.mxu0 0
  %136 = vmatpush1.bf16.msra.mxu0 0
  %137 = vmatprep.subr.bf16.mxu0 0
  %138 = vmatpush1.bf16.msra.mxu0 0
  %139 = vmatprep.mubr.bf16.mxu0 0
  %140 = vmatmul.mubr.bf16.gmra.mrb[0].mxu0 %v55
  %v141 = vpop.f32.mrb[0].mxu0
  %v142 = vadd.f32 0.0, %v141
  %v143 = vpop.f32.mrb[0].mxu0
  %v144 = vpop.f32.mrb[0].mxu0
  %v145 = vadd.f32 0.0, %v144
  %v146 = vpop.f32.mrb[0].mxu0
  %147 = vmatprep.mubr.bf16.mxu0 0
  %148 = vmatmul.mubr.bf16.gmra.mrb[0].mxu0 %v56
  %v149 = vpop.f32.mrb[0].mxu0
  %v150 = vadd.f32 0.0, %v149
  %v151 = vpop.f32.mrb[0].mxu0
  %v152 = vpop.f32.mrb[0].mxu0
  %v153 = vadd.f32 0.0, %v152
  %v154 = vpop.f32.mrb[0].mxu0
  %155 = vdwg.mxu0
  %v156 = vadd.f32 %v23, %v142
  %v157 = vadd.f32 %v24, %v145
  %v158 = vadd.f32 %v25, %v150
  %v159 = vadd.f32 %v26, %v153
  %160 = vst [vmem:[#allocation2] sm:$0xff] %v156
  %161 = vst [vmem:[#allocation2 + $0x8] sm:$0xff] %v157
  %162 = vst [vmem:[#allocation2 + $0x10] sm:$0xff] %v158
  %163 = vst [vmem:[#allocation2 + $0x18] sm:$0xff] %v159
  // Predicated region
  $region18: #{discriminator_forward.6} parent=0 // pred_check
    %p164 = pneg %p15
  $region19: #{discriminator_forward.6} parent=0 // pred_check_branch
    %166 = sbr.rel (%p164) target = $region21
  $region20: #{discriminator_forward.6} parent=0 // pred_region
    %v167 = vld [vmem:[#allocation2] sm:$0xff]
    %v168 = vld [vmem:[#allocation2 + $0x8] sm:$0xff]
    %v169 = vld [vmem:[#allocation2 + $0x10] sm:$0xff]
    %v170 = vld [vmem:[#allocation2 + $0x18] sm:$0xff]
    %v171 = vld [vmem:[%s2] sm:$0x1]
    %v173 = vlaneseq
    %v174 = vshrl.u32 %v173, 7
    %v175 = vsub.s32 0, %v174
    %v176 = vrot.slane %v171, %v175
    %v178 = vadd.f32 %v167, %v176
    %v179 = vadd.f32 %v168, %v176
    %v180 = vadd.f32 %v169, %v176
    %v181 = vadd.f32 %v170, %v176
    %vm182 = vcmp.ge.f32.partialorder %v178, 0.0
    %vm183 = vcmp.ge.f32.partialorder %v179, 0.0
    %vm184 = vcmp.ge.f32.partialorder %v180, 0.0
    %vm185 = vcmp.ge.f32.partialorder %v181, 0.0
    %v186 = vmul.f32 %v178, 0.01
    %v187 = vmul.f32 %v179, 0.01
    %v188 = vmul.f32 %v180, 0.01
    %v189 = vmul.f32 %v181, 0.01
    %v190 = vsel %vm182, %v178, %v186
    %v191 = vsel %vm183, %v179, %v187
    %v192 = vsel %vm184, %v180, %v188
    %v193 = vsel %vm185, %v181, %v189
    %194 = vst [vmem:[%s3] sm:$0xff] %v190
    %195 = vst [vmem:[%s3 + $0x8] sm:$0xff] %v191
    %196 = vst [vmem:[%s3 + $0x10] sm:$0xff] %v192
    %197 = vst [vmem:[%s3 + $0x18] sm:$0xff] %v193
  $region21: #{discriminator_forward.6} parent=0 // pred_fallthru
    _
  // Predicated region
  $region22: #{discriminator_forward.6} parent=0 // pred_check
    _
  $region23: #{discriminator_forward.6} parent=0 // pred_check_branch
    %199 = sbr.rel (0) target = $region25
  $region24: #{discriminator_forward.6} parent=0 // pred_region
    _
  $region25: #{discriminator_forward.6} parent=0 // pred_fallthru
    _
  // Predicated region
  $region26: #{discriminator_forward.6} parent=0 // pred_check
    _
  $region27: #{discriminator_forward.6} parent=0 // pred_check_branch
    %201 = sbr.rel (0) target = $region29
  $region28: #{discriminator_forward.6} parent=0 // pred_region
    _
  $region29: #{discriminator_forward.6} parent=0 // pred_fallthru
    _

// kernel: discriminator_forward.7
$region0: #{discriminator_forward.7}
  #allocation0 [shape = 'u32[]', space=smem, size = 0x4, offset = 0x4, fixed_abs, tag = 'smem constant byte address 0x4 - core index']
  #allocation1 [shape = 'u32[144,128]{1,0:T(1,128)}', space=vmem, size = 0x12000, scoped, tag = 'internal scratch']
  #allocation2 [shape = 'f32[8,128]{1,0:T(8,128)}', space=vmem, size = 0x1000, scoped, tag = 'scratch operand']
  %s0 = inlined_call_operand.vmem [shape: bf16[8,256], index: 0, kind: input, shape index: {}]
  %s1 = inlined_call_operand.vmem [shape: bf16[256,128], index: 1, kind: input, shape index: {}]
  %s2 = inlined_call_operand.vmem [shape: f32[1,128], index: 2, kind: input, shape index: {}]
  %s3 = inlined_call_operand.vmem [shape: f32[8,128], index: 3, kind: output, shape index: {}]
  %s4 = sld [smem:[#allocation0]]
  $region30: #{discriminator_forward.7} parent=0
    _
  %s6 = ssub.s32 1, %s4
  %s7 = scalar_select 0, %s6, %s4
  // Predicated region
  $region2: #{discriminator_forward.7} parent=0 // pred_check
    _
  $region3: #{discriminator_forward.7} parent=0 // pred_check_branch
    %9 = sbr.rel (0) target = $region5
  $region4: #{discriminator_forward.7} parent=0 // pred_region
    _
  $region5: #{discriminator_forward.7} parent=0 // pred_fallthru
    _
  // Predicated region
  $region6: #{discriminator_forward.7} parent=0 // pred_check
    _
  $region7: #{discriminator_forward.7} parent=0 // pred_check_branch
    %11 = sbr.rel (0) target = $region9
  $region8: #{discriminator_forward.7} parent=0 // pred_region
    _
  $region9: #{discriminator_forward.7} parent=0 // pred_fallthru
    _
  // Predicated region
  $region10: #{discriminator_forward.7} parent=0 // pred_check
    _
  $region11: #{discriminator_forward.7} parent=0 // pred_check_branch
    %13 = sbr.rel (0) target = $region13
  $region12: #{discriminator_forward.7} parent=0 // pred_region
    _
  $region13: #{discriminator_forward.7} parent=0 // pred_fallthru
    _
  %p15 = scmp.eq.s32.totalorder 0, 0
  // Predicated region
  $region14: #{discriminator_forward.7} parent=0 // pred_check
    %p16 = pneg %p15
  $region15: #{discriminator_forward.7} parent=0 // pred_check_branch
    %18 = sbr.rel (%p16) target = $region17
  $region16: #{discriminator_forward.7} parent=0 // pred_region
    %19 = vst [vmem:[#allocation2] sm:$0xff] 0.0
  $region17: #{discriminator_forward.7} parent=0 // pred_fallthru
    _
  %v20 = vld [vmem:[#allocation2] sm:$0xff]
  %v21 = vld [vmem:[%s0] sm:$0xff]
  %v22 = vld [vmem:[%s1] sm:$0xf]
  %v23 = vld [vmem:[%s1 + $0x4] sm:$0xf]
  %v24 = vld [vmem:[%s1 + $0x8] sm:$0xf]
  %v25 = vld [vmem:[%s1 + $0xc] sm:$0xf]
  %v26 = vld [vmem:[%s1 + $0x10] sm:$0xf]
  %v27 = vld [vmem:[%s1 + $0x14] sm:$0xf]
  %v28 = vld [vmem:[%s1 + $0x18] sm:$0xf]
  %v29 = vld [vmem:[%s1 + $0x1c] sm:$0xf]
  %v30 = vld [vmem:[%s1 + $0x20] sm:$0xf]
  %v31 = vld [vmem:[%s1 + $0x24] sm:$0xf]
  %v32 = vld [vmem:[%s1 + $0x28] sm:$0xf]
  %v33 = vld [vmem:[%s1 + $0x2c] sm:$0xf]
  %v34 = vld [vmem:[%s1 + $0x30] sm:$0xf]
  %v35 = vld [vmem:[%s1 + $0x34] sm:$0xf]
  %v36 = vld [vmem:[%s1 + $0x38] sm:$0xf]
  %v37 = vld [vmem:[%s1 + $0x3c] sm:$0xf]
  %v38 = vld [vmem:[%s1 + $0x40] sm:$0xf]
  %v39 = vld [vmem:[%s1 + $0x44] sm:$0xf]
  %v40 = vld [vmem:[%s1 + $0x48] sm:$0xf]
  %v41 = vld [vmem:[%s1 + $0x4c] sm:$0xf]
  %v42 = vld [vmem:[%s1 + $0x50] sm:$0xf]
  %v43 = vld [vmem:[%s1 + $0x54] sm:$0xf]
  %v44 = vld [vmem:[%s1 + $0x58] sm:$0xf]
  %v45 = vld [vmem:[%s1 + $0x5c] sm:$0xf]
  %v46 = vld [vmem:[%s1 + $0x60] sm:$0xf]
  %v47 = vld [vmem:[%s1 + $0x64] sm:$0xf]
  %v48 = vld [vmem:[%s1 + $0x68] sm:$0xf]
  %v49 = vld [vmem:[%s1 + $0x6c] sm:$0xf]
  %v50 = vld [vmem:[%s1 + $0x70] sm:$0xf]
  %v51 = vld [vmem:[%s1 + $0x74] sm:$0xf]
  %v52 = vld [vmem:[%s1 + $0x78] sm:$0xf]
  %v53 = vld [vmem:[%s1 + $0x7c] sm:$0xf]
  %v55 = vunpack.c.l.b16 %v21
  %v56 = vunpack.c.h.b16 %v21
  %v57 = vpack.c.b16 %v55, %v55
  %v58 = vpack.c.b16 %v56, %v56
  %v93 = vunpack.c.l.b16 %v22
  %v94 = vunpack.c.l.b16 %v23
  %v95 = vunpack.c.l.b16 %v24
  %v96 = vunpack.c.l.b16 %v25
  %v97 = vunpack.c.l.b16 %v26
  %v98 = vunpack.c.l.b16 %v27
  %v99 = vunpack.c.l.b16 %v28
  %v100 = vunpack.c.l.b16 %v29
  %v101 = vunpack.c.l.b16 %v30
  %v102 = vunpack.c.l.b16 %v31
  %v103 = vunpack.c.l.b16 %v32
  %v104 = vunpack.c.l.b16 %v33
  %v105 = vunpack.c.l.b16 %v34
  %v106 = vunpack.c.l.b16 %v35
  %v107 = vunpack.c.l.b16 %v36
  %v108 = vunpack.c.l.b16 %v37
  %v109 = vunpack.c.l.b16 %v38
  %v110 = vunpack.c.l.b16 %v39
  %v111 = vunpack.c.l.b16 %v40
  %v112 = vunpack.c.l.b16 %v41
  %v113 = vunpack.c.l.b16 %v42
  %v114 = vunpack.c.l.b16 %v43
  %v115 = vunpack.c.l.b16 %v44
  %v116 = vunpack.c.l.b16 %v45
  %v117 = vunpack.c.l.b16 %v46
  %v118 = vunpack.c.l.b16 %v47
  %v119 = vunpack.c.l.b16 %v48
  %v120 = vunpack.c.l.b16 %v49
  %v121 = vunpack.c.l.b16 %v50
  %v122 = vunpack.c.l.b16 %v51
  %v123 = vunpack.c.l.b16 %v52
  %v124 = vunpack.c.l.b16 %v53
  %v125 = vpack.c.b16 %v94, %v93
  %v126 = vpack.c.b16 %v96, %v95
  %v127 = vpack.c.b16 %v98, %v97
  %v128 = vpack.c.b16 %v100, %v99
  %v129 = vpack.c.b16 %v102, %v101
  %v130 = vpack.c.b16 %v104, %v103
  %v131 = vpack.c.b16 %v106, %v105
  %v132 = vpack.c.b16 %v108, %v107
  %v133 = vpack.c.b16 %v110, %v109
  %v134 = vpack.c.b16 %v112, %v111
  %v135 = vpack.c.b16 %v114, %v113
  %v136 = vpack.c.b16 %v116, %v115
  %v137 = vpack.c.b16 %v118, %v117
  %v138 = vpack.c.b16 %v120, %v119
  %v139 = vpack.c.b16 %v122, %v121
  %v140 = vpack.c.b16 %v124, %v123
  %157 = vmatprep.subr.bf16.mxu0 0
  %158 = vmatpush1.bf16.msra.mxu0 %v125
  %159 = vmatprep.subr.bf16.mxu0 0
  %160 = vmatpush1.bf16.msra.mxu0 %v126
  %161 = vmatprep.subr.bf16.mxu0 0
  %162 = vmatpush1.bf16.msra.mxu0 %v127
  %163 = vmatprep.subr.bf16.mxu0 0
  %164 = vmatpush1.bf16.msra.mxu0 %v128
  %165 = vmatprep.subr.bf16.mxu0 0
  %166 = vmatpush1.bf16.msra.mxu0 %v129
  %167 = vmatprep.subr.bf16.mxu0 0
  %168 = vmatpush1.bf16.msra.mxu0 %v130
  %169 = vmatprep.subr.bf16.mxu0 0
  %170 = vmatpush1.bf16.msra.mxu0 %v131
  %171 = vmatprep.subr.bf16.mxu0 0
  %172 = vmatpush1.bf16.msra.mxu0 %v132
  %173 = vmatprep.subr.bf16.mxu0 0
  %174 = vmatpush1.bf16.msra.mxu0 %v133
  %175 = vmatprep.subr.bf16.mxu0 0
  %176 = vmatpush1.bf16.msra.mxu0 %v134
  %177 = vmatprep.subr.bf16.mxu0 0
  %178 = vmatpush1.bf16.msra.mxu0 %v135
  %179 = vmatprep.subr.bf16.mxu0 0
  %180 = vmatpush1.bf16.msra.mxu0 %v136
  %181 = vmatprep.subr.bf16.mxu0 0
  %182 = vmatpush1.bf16.msra.mxu0 %v137
  %183 = vmatprep.subr.bf16.mxu0 0
  %184 = vmatpush1.bf16.msra.mxu0 %v138
  %185 = vmatprep.subr.bf16.mxu0 0
  %186 = vmatpush1.bf16.msra.mxu0 %v139
  %187 = vmatprep.subr.bf16.mxu0 0
  %188 = vmatpush1.bf16.msra.mxu0 %v140
  %189 = vmatprep.mubr.bf16.mxu0 %v58
  %190 = vmatmul.mubr.bf16.gmra.mrb[0].mxu0 %v57
  %v191 = vpop.f32.mrb[0].mxu0
  %v192 = vadd.f32 0.0, %v191
  %v193 = vpop.f32.mrb[0].mxu0
  %v194 = vpop.f32.mrb[0].mxu0
  %v195 = vpop.f32.mrb[0].mxu0
  %196 = vdwg.mxu0
  %v197 = vadd.f32 %v20, %v192
  %198 = vst [vmem:[#allocation2] sm:$0xff] %v197
  // Predicated region
  $region18: #{discriminator_forward.7} parent=0 // pred_check
    %p199 = pneg %p15
  $region19: #{discriminator_forward.7} parent=0 // pred_check_branch
    %201 = sbr.rel (%p199) target = $region21
  $region20: #{discriminator_forward.7} parent=0 // pred_region
    %v202 = vld [vmem:[#allocation2] sm:$0xff]
    %v203 = vld [vmem:[%s2] sm:$0x1]
    %v205 = vlaneseq
    %v206 = vshrl.u32 %v205, 7
    %v207 = vsub.s32 0, %v206
    %v208 = vrot.slane %v203, %v207
    %v210 = vadd.f32 %v202, %v208
    %vm211 = vcmp.ge.f32.partialorder %v210, 0.0
    %v212 = vmul.f32 %v210, 0.01
    %v213 = vsel %vm211, %v210, %v212
    %214 = vst [vmem:[%s3] sm:$0xff] %v213
  $region21: #{discriminator_forward.7} parent=0 // pred_fallthru
    _
  // Predicated region
  $region22: #{discriminator_forward.7} parent=0 // pred_check
    _
  $region23: #{discriminator_forward.7} parent=0 // pred_check_branch
    %216 = sbr.rel (0) target = $region25
  $region24: #{discriminator_forward.7} parent=0 // pred_region
    _
  $region25: #{discriminator_forward.7} parent=0 // pred_fallthru
    _
  // Predicated region
  $region26: #{discriminator_forward.7} parent=0 // pred_check
    _
  $region27: #{discriminator_forward.7} parent=0 // pred_check_branch
    %218 = sbr.rel (0) target = $region29
  $region28: #{discriminator_forward.7} parent=0 // pred_region
    _
  $region29: #{discriminator_forward.7} parent=0 // pred_fallthru
    _

// kernel: discriminator_forward.8
$region0: #{discriminator_forward.8}
  #allocation0 [shape = 'u32[]', space=smem, size = 0x4, offset = 0x4, fixed_abs, tag = 'smem constant byte address 0x4 - core index']
  #allocation1 [shape = 'u32[144,128]{1,0:T(1,128)}', space=vmem, size = 0x12000, scoped, tag = 'internal scratch']
  #allocation2 [shape = 'f32[8,128]{1,0:T(8,128)}', space=vmem, size = 0x1000, scoped, tag = 'scratch operand']
  %s0 = inlined_call_operand.vmem [shape: bf16[8,384], index: 0, kind: input, shape index: {}]
  %s1 = inlined_call_operand.vmem [shape: bf16[384,128], index: 1, kind: input, shape index: {}]
  %s2 = inlined_call_operand.vmem [shape: f32[8,128], index: 2, kind: output, shape index: {}]
  %s3 = sld [smem:[#allocation0]]
  $region26: #{discriminator_forward.8} parent=0
    _
  %s5 = ssub.s32 1, %s3
  %s6 = scalar_select 0, %s5, %s3
  // Predicated region
  $region2: #{discriminator_forward.8} parent=0 // pred_check
    _
  $region3: #{discriminator_forward.8} parent=0 // pred_check_branch
    %8 = sbr.rel (0) target = $region5
  $region4: #{discriminator_forward.8} parent=0 // pred_region
    _
  $region5: #{discriminator_forward.8} parent=0 // pred_fallthru
    _
  // Predicated region
  $region6: #{discriminator_forward.8} parent=0 // pred_check
    _
  $region7: #{discriminator_forward.8} parent=0 // pred_check_branch
    %10 = sbr.rel (0) target = $region9
  $region8: #{discriminator_forward.8} parent=0 // pred_region
    _
  $region9: #{discriminator_forward.8} parent=0 // pred_fallthru
    _
  %p12 = scmp.eq.s32.totalorder 0, 0
  // Predicated region
  $region10: #{discriminator_forward.8} parent=0 // pred_check
    %p13 = pneg %p12
  $region11: #{discriminator_forward.8} parent=0 // pred_check_branch
    %15 = sbr.rel (%p13) target = $region13
  $region12: #{discriminator_forward.8} parent=0 // pred_region
    %16 = vst [vmem:[#allocation2] sm:$0xff] 0.0
  $region13: #{discriminator_forward.8} parent=0 // pred_fallthru
    _
  %v17 = vld [vmem:[#allocation2] sm:$0xff]
  %v18 = vld [vmem:[%s0] sm:$0xff]
  %v19 = vld [vmem:[%s0 + $0x8] sm:$0xf]
  %v20 = vld [vmem:[%s1] sm:$0xf]
  %v21 = vld [vmem:[%s1 + $0x4] sm:$0xf]
  %v22 = vld [vmem:[%s1 + $0x8] sm:$0xf]
  %v23 = vld [vmem:[%s1 + $0xc] sm:$0xf]
  %v24 = vld [vmem:[%s1 + $0x10] sm:$0xf]
  %v25 = vld [vmem:[%s1 + $0x14] sm:$0xf]
  %v26 = vld [vmem:[%s1 + $0x18] sm:$0xf]
  %v27 = vld [vmem:[%s1 + $0x1c] sm:$0xf]
  %v28 = vld [vmem:[%s1 + $0x20] sm:$0xf]
  %v29 = vld [vmem:[%s1 + $0x24] sm:$0xf]
  %v30 = vld [vmem:[%s1 + $0x28] sm:$0xf]
  %v31 = vld [vmem:[%s1 + $0x2c] sm:$0xf]
  %v32 = vld [vmem:[%s1 + $0x30] sm:$0xf]
  %v33 = vld [vmem:[%s1 + $0x34] sm:$0xf]
  %v34 = vld [vmem:[%s1 + $0x38] sm:$0xf]
  %v35 = vld [vmem:[%s1 + $0x3c] sm:$0xf]
  %v36 = vld [vmem:[%s1 + $0x40] sm:$0xf]
  %v37 = vld [vmem:[%s1 + $0x44] sm:$0xf]
  %v38 = vld [vmem:[%s1 + $0x48] sm:$0xf]
  %v39 = vld [vmem:[%s1 + $0x4c] sm:$0xf]
  %v40 = vld [vmem:[%s1 + $0x50] sm:$0xf]
  %v41 = vld [vmem:[%s1 + $0x54] sm:$0xf]
  %v42 = vld [vmem:[%s1 + $0x58] sm:$0xf]
  %v43 = vld [vmem:[%s1 + $0x5c] sm:$0xf]
  %v44 = vld [vmem:[%s1 + $0x60] sm:$0xf]
  %v45 = vld [vmem:[%s1 + $0x64] sm:$0xf]
  %v46 = vld [vmem:[%s1 + $0x68] sm:$0xf]
  %v47 = vld [vmem:[%s1 + $0x6c] sm:$0xf]
  %v48 = vld [vmem:[%s1 + $0x70] sm:$0xf]
  %v49 = vld [vmem:[%s1 + $0x74] sm:$0xf]
  %v50 = vld [vmem:[%s1 + $0x78] sm:$0xf]
  %v51 = vld [vmem:[%s1 + $0x7c] sm:$0xf]
  %v52 = vld [vmem:[%s1 + $0x80] sm:$0xf]
  %v53 = vld [vmem:[%s1 + $0x84] sm:$0xf]
  %v54 = vld [vmem:[%s1 + $0x88] sm:$0xf]
  %v55 = vld [vmem:[%s1 + $0x8c] sm:$0xf]
  %v56 = vld [vmem:[%s1 + $0x90] sm:$0xf]
  %v57 = vld [vmem:[%s1 + $0x94] sm:$0xf]
  %v58 = vld [vmem:[%s1 + $0x98] sm:$0xf]
  %v59 = vld [vmem:[%s1 + $0x9c] sm:$0xf]
  %v60 = vld [vmem:[%s1 + $0xa0] sm:$0xf]
  %v61 = vld [vmem:[%s1 + $0xa4] sm:$0xf]
  %v62 = vld [vmem:[%s1 + $0xa8] sm:$0xf]
  %v63 = vld [vmem:[%s1 + $0xac] sm:$0xf]
  %v64 = vld [vmem:[%s1 + $0xb0] sm:$0xf]
  %v65 = vld [vmem:[%s1 + $0xb4] sm:$0xf]
  %v66 = vld [vmem:[%s1 + $0xb8] sm:$0xf]
  %v67 = vld [vmem:[%s1 + $0xbc] sm:$0xf]
  %v70 = vunpack.c.l.b16 %v18
  %v71 = vunpack.c.h.b16 %v18
  %v72 = vunpack.c.l.b16 %v19
  %v73 = vpack.c.b16 %v70, %v70
  %v74 = vpack.c.b16 %v71, %v71
  %v75 = vpack.c.b16 %v72, %v72
  %v127 = vunpack.c.l.b16 %v20
  %v128 = vunpack.c.l.b16 %v21
  %v129 = vunpack.c.l.b16 %v22
  %v130 = vunpack.c.l.b16 %v23
  %v131 = vunpack.c.l.b16 %v24
  %v132 = vunpack.c.l.b16 %v25
  %v133 = vunpack.c.l.b16 %v26
  %v134 = vunpack.c.l.b16 %v27
  %v135 = vunpack.c.l.b16 %v28
  %v136 = vunpack.c.l.b16 %v29
  %v137 = vunpack.c.l.b16 %v30
  %v138 = vunpack.c.l.b16 %v31
  %v139 = vunpack.c.l.b16 %v32
  %v140 = vunpack.c.l.b16 %v33
  %v141 = vunpack.c.l.b16 %v34
  %v142 = vunpack.c.l.b16 %v35
  %v143 = vunpack.c.l.b16 %v36
  %v144 = vunpack.c.l.b16 %v37
  %v145 = vunpack.c.l.b16 %v38
  %v146 = vunpack.c.l.b16 %v39
  %v147 = vunpack.c.l.b16 %v40
  %v148 = vunpack.c.l.b16 %v41
  %v149 = vunpack.c.l.b16 %v42
  %v150 = vunpack.c.l.b16 %v43
  %v151 = vunpack.c.l.b16 %v44
  %v152 = vunpack.c.l.b16 %v45
  %v153 = vunpack.c.l.b16 %v46
  %v154 = vunpack.c.l.b16 %v47
  %v155 = vunpack.c.l.b16 %v48
  %v156 = vunpack.c.l.b16 %v49
  %v157 = vunpack.c.l.b16 %v50
  %v158 = vunpack.c.l.b16 %v51
  %v159 = vunpack.c.l.b16 %v52
  %v160 = vunpack.c.l.b16 %v53
  %v161 = vunpack.c.l.b16 %v54
  %v162 = vunpack.c.l.b16 %v55
  %v163 = vunpack.c.l.b16 %v56
  %v164 = vunpack.c.l.b16 %v57
  %v165 = vunpack.c.l.b16 %v58
  %v166 = vunpack.c.l.b16 %v59
  %v167 = vunpack.c.l.b16 %v60
  %v168 = vunpack.c.l.b16 %v61
  %v169 = vunpack.c.l.b16 %v62
  %v170 = vunpack.c.l.b16 %v63
  %v171 = vunpack.c.l.b16 %v64
  %v172 = vunpack.c.l.b16 %v65
  %v173 = vunpack.c.l.b16 %v66
  %v174 = vunpack.c.l.b16 %v67
  %v175 = vpack.c.b16 %v128, %v127
  %v176 = vpack.c.b16 %v130, %v129
  %v177 = vpack.c.b16 %v132, %v131
  %v178 = vpack.c.b16 %v134, %v133
  %v179 = vpack.c.b16 %v136, %v135
  %v180 = vpack.c.b16 %v138, %v137
  %v181 = vpack.c.b16 %v140, %v139
  %v182 = vpack.c.b16 %v142, %v141
  %v183 = vpack.c.b16 %v144, %v143
  %v184 = vpack.c.b16 %v146, %v145
  %v185 = vpack.c.b16 %v148, %v147
  %v186 = vpack.c.b16 %v150, %v149
  %v187 = vpack.c.b16 %v152, %v151
  %v188 = vpack.c.b16 %v154, %v153
  %v189 = vpack.c.b16 %v156, %v155
  %v190 = vpack.c.b16 %v158, %v157
  %v191 = vpack.c.b16 %v160, %v159
  %v192 = vpack.c.b16 %v162, %v161
  %v193 = vpack.c.b16 %v164, %v163
  %v194 = vpack.c.b16 %v166, %v165
  %v195 = vpack.c.b16 %v168, %v167
  %v196 = vpack.c.b16 %v170, %v169
  %v197 = vpack.c.b16 %v172, %v171
  %v198 = vpack.c.b16 %v174, %v173
  %223 = vmatprep.subr.bf16.mxu0 0
  %224 = vmatpush1.bf16.msra.mxu0 %v175
  %225 = vmatprep.subr.bf16.mxu0 0
  %226 = vmatpush1.bf16.msra.mxu0 %v176
  %227 = vmatprep.subr.bf16.mxu0 0
  %228 = vmatpush1.bf16.msra.mxu0 %v177
  %229 = vmatprep.subr.bf16.mxu0 0
  %230 = vmatpush1.bf16.msra.mxu0 %v178
  %231 = vmatprep.subr.bf16.mxu0 0
  %232 = vmatpush1.bf16.msra.mxu0 %v179
  %233 = vmatprep.subr.bf16.mxu0 0
  %234 = vmatpush1.bf16.msra.mxu0 %v180
  %235 = vmatprep.subr.bf16.mxu0 0
  %236 = vmatpush1.bf16.msra.mxu0 %v181
  %237 = vmatprep.subr.bf16.mxu0 0
  %238 = vmatpush1.bf16.msra.mxu0 %v182
  %239 = vmatprep.subr.bf16.mxu0 0
  %240 = vmatpush1.bf16.msra.mxu0 %v183
  %241 = vmatprep.subr.bf16.mxu0 0
  %242 = vmatpush1.bf16.msra.mxu0 %v184
  %243 = vmatprep.subr.bf16.mxu0 0
  %244 = vmatpush1.bf16.msra.mxu0 %v185
  %245 = vmatprep.subr.bf16.mxu0 0
  %246 = vmatpush1.bf16.msra.mxu0 %v186
  %247 = vmatprep.subr.bf16.mxu0 0
  %248 = vmatpush1.bf16.msra.mxu0 %v187
  %249 = vmatprep.subr.bf16.mxu0 0
  %250 = vmatpush1.bf16.msra.mxu0 %v188
  %251 = vmatprep.subr.bf16.mxu0 0
  %252 = vmatpush1.bf16.msra.mxu0 %v189
  %253 = vmatprep.subr.bf16.mxu0 0
  %254 = vmatpush1.bf16.msra.mxu0 %v190
  %255 = vmatprep.mubr.bf16.mxu0 %v74
  %256 = vmatmul.mubr.bf16.gmra.mrb[0].mxu0 %v73
  %v257 = vpop.f32.mrb[0].mxu0
  %v258 = vadd.f32 0.0, %v257
  %v259 = vpop.f32.mrb[0].mxu0
  %v260 = vpop.f32.mrb[0].mxu0
  %v261 = vpop.f32.mrb[0].mxu0
  %262 = vdwg.mxu0
  %263 = vmatprep.subr.bf16.mxu0 0
  %264 = vmatpush1.bf16.msra.mxu0 %v191
  %265 = vmatprep.subr.bf16.mxu0 0
  %266 = vmatpush1.bf16.msra.mxu0 %v192
  %267 = vmatprep.subr.bf16.mxu0 0
  %268 = vmatpush1.bf16.msra.mxu0 %v193
  %269 = vmatprep.subr.bf16.mxu0 0
  %270 = vmatpush1.bf16.msra.mxu0 %v194
  %271 = vmatprep.subr.bf16.mxu0 0
  %272 = vmatpush1.bf16.msra.mxu0 %v195
  %273 = vmatprep.subr.bf16.mxu0 0
  %274 = vmatpush1.bf16.msra.mxu0 %v196
  %275 = vmatprep.subr.bf16.mxu0 0
  %276 = vmatpush1.bf16.msra.mxu0 %v197
  %277 = vmatprep.subr.bf16.mxu0 0
  %278 = vmatpush1.bf16.msra.mxu0 %v198
  %279 = vmatprep.subr.bf16.mxu0 0
  %280 = vmatpush1.bf16.msra.mxu0 0
  %281 = vmatprep.subr.bf16.mxu0 0
  %282 = vmatpush1.bf16.msra.mxu0 0
  %283 = vmatprep.subr.bf16.mxu0 0
  %284 = vmatpush1.bf16.msra.mxu0 0
  %285 = vmatprep.subr.bf16.mxu0 0
  %286 = vmatpush1.bf16.msra.mxu0 0
  %287 = vmatprep.subr.bf16.mxu0 0
  %288 = vmatpush1.bf16.msra.mxu0 0
  %289 = vmatprep.subr.bf16.mxu0 0
  %290 = vmatpush1.bf16.msra.mxu0 0
  %291 = vmatprep.subr.bf16.mxu0 0
  %292 = vmatpush1.bf16.msra.mxu0 0
  %293 = vmatprep.subr.bf16.mxu0 0
  %294 = vmatpush1.bf16.msra.mxu0 0
  %295 = vmatprep.mubr.bf16.mxu0 0
  %296 = vmatmul.mubr.bf16.gmra.mrb[0].mxu0 %v75
  %v297 = vpop.f32.mrb[0].mxu0
  %v298 = vadd.f32 %v258, %v297
  %v299 = vpop.f32.mrb[0].mxu0
  %v300 = vpop.f32.mrb[0].mxu0
  %v301 = vpop.f32.mrb[0].mxu0
  %302 = vdwg.mxu0
  %v303 = vadd.f32 %v17, %v298
  %304 = vst [vmem:[#allocation2] sm:$0xff] %v303
  // Predicated region
  $region14: #{discriminator_forward.8} parent=0 // pred_check
    %p305 = pneg %p12
  $region15: #{discriminator_forward.8} parent=0 // pred_check_branch
    %307 = sbr.rel (%p305) target = $region17
  $region16: #{discriminator_forward.8} parent=0 // pred_region
    %v308 = vld [vmem:[#allocation2] sm:$0xff]
    %309 = vst [vmem:[%s2] sm:$0xff] %v308
  $region17: #{discriminator_forward.8} parent=0 // pred_fallthru
    _
  // Predicated region
  $region18: #{discriminator_forward.8} parent=0 // pred_check
    _
  $region19: #{discriminator_forward.8} parent=0 // pred_check_branch
    %311 = sbr.rel (0) target = $region21
  $region20: #{discriminator_forward.8} parent=0 // pred_region
    _
  $region21: #{discriminator_forward.8} parent=0 // pred_fallthru
    _
  // Predicated region
  $region22: #{discriminator_forward.8} parent=0 // pred_check
    _
  $region23: #{discriminator_forward.8} parent=0 // pred_check_branch
    %313 = sbr.rel (0) target = $region25
  $region24: #{discriminator_forward.8} parent=0 // pred_region
    _
  $region25: #{discriminator_forward.8} parent=0 // pred_fallthru
    _

// kernel: discriminator_forward.9
$region0: #{discriminator_forward.9}
  #allocation0 [shape = 'u32[]', space=smem, size = 0x4, offset = 0x4, fixed_abs, tag = 'smem constant byte address 0x4 - core index']
  #allocation1 [shape = 'u32[144,128]{1,0:T(1,128)}', space=vmem, size = 0x12000, scoped, tag = 'internal scratch']
  #allocation2 [shape = 'f32[8,128]{1,0:T(8,128)}', space=vmem, size = 0x1000, scoped, tag = 'scratch operand']
  %s0 = inlined_call_operand.vmem [shape: bf16[8,128], index: 0, kind: input, shape index: {}]
  %s1 = inlined_call_operand.vmem [shape: bf16[128,128], index: 1, kind: input, shape index: {}]
  %s2 = inlined_call_operand.vmem [shape: f32[8,128], index: 2, kind: output, shape index: {}]
  %s3 = sld [smem:[#allocation0]]
  $region26: #{discriminator_forward.9} parent=0
    _
  %s5 = ssub.s32 1, %s3
  %s6 = scalar_select 0, %s5, %s3
  // Predicated region
  $region2: #{discriminator_forward.9} parent=0 // pred_check
    _
  $region3: #{discriminator_forward.9} parent=0 // pred_check_branch
    %8 = sbr.rel (0) target = $region5
  $region4: #{discriminator_forward.9} parent=0 // pred_region
    _
  $region5: #{discriminator_forward.9} parent=0 // pred_fallthru
    _
  // Predicated region
  $region6: #{discriminator_forward.9} parent=0 // pred_check
    _
  $region7: #{discriminator_forward.9} parent=0 // pred_check_branch
    %10 = sbr.rel (0) target = $region9
  $region8: #{discriminator_forward.9} parent=0 // pred_region
    _
  $region9: #{discriminator_forward.9} parent=0 // pred_fallthru
    _
  %p12 = scmp.eq.s32.totalorder 0, 0
  // Predicated region
  $region10: #{discriminator_forward.9} parent=0 // pred_check
    %p13 = pneg %p12
  $region11: #{discriminator_forward.9} parent=0 // pred_check_branch
    %15 = sbr.rel (%p13) target = $region13
  $region12: #{discriminator_forward.9} parent=0 // pred_region
    %16 = vst [vmem:[#allocation2] sm:$0xff] 0.0
  $region13: #{discriminator_forward.9} parent=0 // pred_fallthru
    _
  %v17 = vld [vmem:[#allocation2] sm:$0xff]
  %v18 = vld [vmem:[%s0] sm:$0xf]
  %v19 = vld [vmem:[%s1] sm:$0xf]
  %v20 = vld [vmem:[%s1 + $0x4] sm:$0xf]
  %v21 = vld [vmem:[%s1 + $0x8] sm:$0xf]
  %v22 = vld [vmem:[%s1 + $0xc] sm:$0xf]
  %v23 = vld [vmem:[%s1 + $0x10] sm:$0xf]
  %v24 = vld [vmem:[%s1 + $0x14] sm:$0xf]
  %v25 = vld [vmem:[%s1 + $0x18] sm:$0xf]
  %v26 = vld [vmem:[%s1 + $0x1c] sm:$0xf]
  %v27 = vld [vmem:[%s1 + $0x20] sm:$0xf]
  %v28 = vld [vmem:[%s1 + $0x24] sm:$0xf]
  %v29 = vld [vmem:[%s1 + $0x28] sm:$0xf]
  %v30 = vld [vmem:[%s1 + $0x2c] sm:$0xf]
  %v31 = vld [vmem:[%s1 + $0x30] sm:$0xf]
  %v32 = vld [vmem:[%s1 + $0x34] sm:$0xf]
  %v33 = vld [vmem:[%s1 + $0x38] sm:$0xf]
  %v34 = vld [vmem:[%s1 + $0x3c] sm:$0xf]
  %v51 = vunpack.c.l.b16 %v19
  %v52 = vunpack.c.l.b16 %v20
  %v53 = vunpack.c.l.b16 %v21
  %v54 = vunpack.c.l.b16 %v22
  %v55 = vunpack.c.l.b16 %v23
  %v56 = vunpack.c.l.b16 %v24
  %v57 = vunpack.c.l.b16 %v25
  %v58 = vunpack.c.l.b16 %v26
  %v59 = vunpack.c.l.b16 %v27
  %v60 = vunpack.c.l.b16 %v28
  %v61 = vunpack.c.l.b16 %v29
  %v62 = vunpack.c.l.b16 %v30
  %v63 = vunpack.c.l.b16 %v31
  %v64 = vunpack.c.l.b16 %v32
  %v65 = vunpack.c.l.b16 %v33
  %v66 = vunpack.c.l.b16 %v34
  %v67 = vpack.c.b16 %v52, %v51
  %v68 = vpack.c.b16 %v54, %v53
  %v69 = vpack.c.b16 %v56, %v55
  %v70 = vpack.c.b16 %v58, %v57
  %v71 = vpack.c.b16 %v60, %v59
  %v72 = vpack.c.b16 %v62, %v61
  %v73 = vpack.c.b16 %v64, %v63
  %v74 = vpack.c.b16 %v66, %v65
  %83 = vmatprep.subr.bf16.mxu0 0
  %84 = vmatpush1.bf16.msra.mxu0 %v67
  %85 = vmatprep.subr.bf16.mxu0 0
  %86 = vmatpush1.bf16.msra.mxu0 %v68
  %87 = vmatprep.subr.bf16.mxu0 0
  %88 = vmatpush1.bf16.msra.mxu0 %v69
  %89 = vmatprep.subr.bf16.mxu0 0
  %90 = vmatpush1.bf16.msra.mxu0 %v70
  %91 = vmatprep.subr.bf16.mxu0 0
  %92 = vmatpush1.bf16.msra.mxu0 %v71
  %93 = vmatprep.subr.bf16.mxu0 0
  %94 = vmatpush1.bf16.msra.mxu0 %v72
  %95 = vmatprep.subr.bf16.mxu0 0
  %96 = vmatpush1.bf16.msra.mxu0 %v73
  %97 = vmatprep.subr.bf16.mxu0 0
  %98 = vmatpush1.bf16.msra.mxu0 %v74
  %99 = vmatprep.subr.bf16.mxu0 0
  %100 = vmatpush1.bf16.msra.mxu0 0
  %101 = vmatprep.subr.bf16.mxu0 0
  %102 = vmatpush1.bf16.msra.mxu0 0
  %103 = vmatprep.subr.bf16.mxu0 0
  %104 = vmatpush1.bf16.msra.mxu0 0
  %105 = vmatprep.subr.bf16.mxu0 0
  %106 = vmatpush1.bf16.msra.mxu0 0
  %107 = vmatprep.subr.bf16.mxu0 0
  %108 = vmatpush1.bf16.msra.mxu0 0
  %109 = vmatprep.subr.bf16.mxu0 0
  %110 = vmatpush1.bf16.msra.mxu0 0
  %111 = vmatprep.subr.bf16.mxu0 0
  %112 = vmatpush1.bf16.msra.mxu0 0
  %113 = vmatprep.subr.bf16.mxu0 0
  %114 = vmatpush1.bf16.msra.mxu0 0
  %115 = vmatprep.mubr.bf16.mxu0 0
  %116 = vmatmul.mubr.bf16.gmra.mrb[0].mxu0 %v18
  %v117 = vpop.f32.mrb[0].mxu0
  %v118 = vadd.f32 0.0, %v117
  %v119 = vpop.f32.mrb[0].mxu0
  %v120 = vpop.f32.mrb[0].mxu0
  %v121 = vpop.f32.mrb[0].mxu0
  %122 = vdwg.mxu0
  %v123 = vadd.f32 %v17, %v118
  %124 = vst [vmem:[#allocation2] sm:$0xff] %v123
  // Predicated region
  $region14: #{discriminator_forward.9} parent=0 // pred_check
    %p125 = pneg %p12
  $region15: #{discriminator_forward.9} parent=0 // pred_check_branch
    %127 = sbr.rel (%p125) target = $region17
  $region16: #{discriminator_forward.9} parent=0 // pred_region
    %v128 = vld [vmem:[#allocation2] sm:$0xff]
    %129 = vst [vmem:[%s2] sm:$0xff] %v128
  $region17: #{discriminator_forward.9} parent=0 // pred_fallthru
    _
  // Predicated region
  $region18: #{discriminator_forward.9} parent=0 // pred_check
    _
  $region19: #{discriminator_forward.9} parent=0 // pred_check_branch
    %131 = sbr.rel (0) target = $region21
  $region20: #{discriminator_forward.9} parent=0 // pred_region
    _
  $region21: #{discriminator_forward.9} parent=0 // pred_fallthru
    _
  // Predicated region
  $region22: #{discriminator_forward.9} parent=0 // pred_check
    _
  $region23: #{discriminator_forward.9} parent=0 // pred_check_branch
    %133 = sbr.rel (0) target = $region25
  $region24: #{discriminator_forward.9} parent=0 // pred_region
    _
  $region25: #{discriminator_forward.9} parent=0 // pred_fallthru
    _

</llo_original>
